<compile_context>
chip_gen: v7x
topology: tpu7x:2x2x1
jax: 0.10.0
libtpu: 0.0.40
codegen_flags: <defaults>
</compile_context>

<pallas_src>
import functools

import numpy as np
import jax
import jax.numpy as jnp
from jax import lax
from jax.experimental import pallas as pl
from jax.experimental.pallas import tpu as pltpu

BN_EPS = 1e-5
BN_MOMENTUM = 0.1  # not used in the forward value; see TODO on running stats below.


def _bilinear_up_matrix_padded(in_size: int, out_size: int) -> np.ndarray:
    """(out_size + 2, in_size) interpolation matrix, align_corners=True semantics.

    Rows 1..out_size hold the bilinear weights; row 0 and row out_size+1 are zero so
    that applying it also produces the zero-padding (pad=1) needed by the 3x3 conv.
    """
    U = np.zeros((out_size + 2, in_size), dtype=np.float32)
    if out_size == 1 or in_size == 1:
        U[1:out_size + 1, 0] = 1.0
        return U
    scale = (in_size - 1) / (out_size - 1)
    for o in range(out_size):
        src = o * scale
        i0 = min(int(np.floor(src)), in_size - 1)
        i1 = min(i0 + 1, in_size - 1)
        frac = src - i0
        U[o + 1, i0] += 1.0 - frac
        U[o + 1, i1] += frac
    return U


def _default_vmem_limit_bytes() -> int:
    """Chip-aware scoped-VMEM limit: ~96MiB on 128MiB parts, ~48MiB on v7x."""
    try:
        cap = int(pltpu.get_tpu_info().vmem_capacity_bytes)
    except Exception:
        cap = 64 * 1024 * 1024
    return int(min(96 * 1024 * 1024, (cap * 3) // 4))


def _conv_pre(x, upmat, w_flat, bias, *, H2, W2, Wp, L, mxu_dtype):
    """Per image: upsample+pad (1 matmul) -> 3x3 conv as ONE fused-tap matmul
    -> compact junk columns away -> +bias.  Returns (Cout, H2*W2) float32."""
    # (Cin, H*W) @ (H*W, Lp) -> (Cin, Lp): flat zero-padded upsample, channel-major.
    up = jnp.dot(x, upmat, preferred_element_type=jnp.float32).astype(mxu_dtype)
    # Tap (kh, kw) reads flat position o + kh*Wp + kw; stacking the 9 lane-shifted
    # slices along sublanes gives a single (9*Cin, L) RHS -> one K=9*Cin matmul.
    rhs = jnp.concatenate(
        [up[:, kh * Wp + kw: kh * Wp + kw + L] for kh in range(3) for kw in range(3)],
        axis=0)
    acc = jnp.dot(w_flat, rhs, preferred_element_type=jnp.float32)    # (Cout, L) f32
    # Drop the 2 junk padding columns per output row while still in VMEM: output row
    # r occupies flat [r*Wp, r*Wp + W2).  Lane-shift slices + concat only.
    pre = jnp.concatenate([acc[:, r * Wp: r * Wp + W2] for r in range(H2)], axis=1)
    return pre + bias                                                  # (Cout, H2*W2)


def _bn_scale_shift(stat_tot, gamma, beta, *, inv_count, eps):
    """(sum, sum_sq) totals -> training-mode BN affine (scale, shift), fp32.

    NOTE: single-pass E[x^2]-E[x]^2 in fp32; adequate at the tolerances used here.
    Switch to shifted sums / Welford if |mean| >> std regimes need tighter parity.
    """
    mean = stat_tot[:, 0:1] * inv_count                       # (Cout, 1)
    var = jnp.maximum(stat_tot[:, 1:2] * inv_count - mean * mean, 0.0)
    scale = gamma * lax.rsqrt(var + eps)
    shift = beta - mean * scale
    return scale, shift
    # TODO(synk): BatchNorm running_mean/running_var momentum updates are a
    # training-time buffer mutation, not part of the forward value, so not emitted.


def _fused_kernel(x_ref, upmat_ref, w_ref, b_ref, gamma_ref, beta_ref, out_ref,
                  pre_ref, stat_ref, *, H2, W2, Wp, L, inv_count, eps, mxu_dtype):
    """grid=(2, N).  Phase 0: conv + per-image stats into persistent VMEM scratch.
    Phase 1: batch-stats BN affine + ReLU directly from that scratch (no HBM trip)."""
    phase = pl.program_id(0)
    n = pl.program_id(1)

    @pl.when(jnp.logical_and(phase == 0, n == 0))
    def _init_stats():
        stat_ref[...] = jnp.zeros_like(stat_ref)

    @pl.when(phase == 0)
    def _conv_phase():
        pre = _conv_pre(x_ref[...], upmat_ref[...], w_ref[...], b_ref[...],
                        H2=H2, W2=W2, Wp=Wp, L=L, mxu_dtype=mxu_dtype)
        pre_ref[n] = pre                                       # stays in VMEM
        s1 = jnp.sum(pre, axis=1, keepdims=True)               # (Cout, 1)
        s2 = jnp.sum(pre * pre, axis=1, keepdims=True)
        stat_ref[...] += jnp.concatenate([s1, s2], axis=1)

    @pl.when(phase == 1)
    def _bn_relu_phase():
        scale, shift = _bn_scale_shift(stat_ref[...], gamma_ref[...], beta_ref[...],
                                       inv_count=inv_count, eps=eps)
        out_ref[...] = jnp.maximum(pre_ref[n] * scale + shift, 0.0)


def _conv_stats_kernel(x_ref, upmat_ref, w_ref, b_ref, pre_ref, stat_ref,
                       *, H2, W2, Wp, L, mxu_dtype):
    """Fallback phase A: conv + bias + per-image (sum, sum_sq); bf16 HBM intermediate."""
    pre = _conv_pre(x_ref[...], upmat_ref[...], w_ref[...], b_ref[...],
                    H2=H2, W2=W2, Wp=Wp, L=L, mxu_dtype=mxu_dtype)
    pre_ref[...] = pre.astype(pre_ref.dtype)         # bf16 store halves HBM bytes
    s1 = jnp.sum(pre, axis=1, keepdims=True)         # stats reduced in f32 pre-cast
    s2 = jnp.sum(pre * pre, axis=1, keepdims=True)
    stat_ref[...] = jnp.concatenate([s1, s2], axis=1)


def _bn_relu_kernel(stat_ref, gamma_ref, beta_ref, pre_ref, out_ref, *, inv_count, eps):
    """Fallback phase B: combine partial stats -> BN affine + ReLU (lane-dense)."""
    tot = jnp.sum(stat_ref[...], axis=0)                        # (Cout, 2)
    scale, shift = _bn_scale_shift(tot, gamma_ref[...], beta_ref[...],
                                   inv_count=inv_count, eps=eps)
    out_ref[...] = jnp.maximum(pre_ref[...].astype(jnp.float32) * scale + shift, 0.0)


def up_conv_forward(x, w, b, gamma, beta, *, mxu_dtype=jnp.bfloat16,
                    max_fused_pre_bytes=8 * 1024 * 1024):
    """x: (N,Cin,H,W); w: (Cout,Cin,3,3); b/gamma/beta: (Cout,) -> (N,Cout,2H,2W)."""
    N, Cin, H, W = x.shape
    Cout = w.shape[0]
    H2, W2 = 2 * H, 2 * W
    Hp, Wp = H2 + 2, W2 + 2
    HW = H * W
    L = H2 * Wp            # flat conv length incl. 2 junk cols per row (VMEM only)
    L2 = H2 * W2           # compact flat output length (lane-dense)
    Lp = Hp * Wp + 2       # flat padded-upsample length (+2 keeps tap slices in range)

    # Upsample+pad as a single matrix: up_flat = x_flat @ kron(Uh, Uw).T
    # TODO(synk): the kron matrix is O((H*W)^2); for large spatial sizes switch to
    # the separable row/column upsample with a spatially tiled grid (+2-row halo).
    Uh = _bilinear_up_matrix_padded(H, H2)                     # (Hp, H), pad rows zero
    Uw = _bilinear_up_matrix_padded(W, W2)                     # (Wp, W)
    upmat_np = np.zeros((HW, Lp), dtype=np.float32)
    upmat_np[:, :Hp * Wp] = np.kron(Uh.T, Uw.T)                # [(h,w),(p,q)] = Uh[p,h]*Uw[q,w]
    upmat = jnp.asarray(upmat_np, dtype=mxu_dtype)

    x_flat = x.reshape(N, Cin, HW).astype(mxu_dtype)
    # (Cout, Cin, 3, 3) -> (Cout, 9*Cin), tap-major (kh, kw) to match the stacked RHS.
    w_flat = jnp.transpose(w.astype(mxu_dtype), (0, 2, 3, 1)).reshape(Cout, 9 * Cin)
    b2 = b.astype(jnp.float32).reshape(Cout, 1)
    g2 = gamma.astype(jnp.float32).reshape(Cout, 1)
    bt2 = beta.astype(jnp.float32).reshape(Cout, 1)

    inv_count = 1.0 / float(N * H2 * W2)
    vmem_limit = _default_vmem_limit_bytes()
    pre_bytes = N * Cout * L2 * 4

    if pre_bytes <= max_fused_pre_bytes:
        # Single pallas_call: the pre-BN activation lives only in VMEM scratch.
        # TODO(synk): grid is sequential ("arbitrary") because BN couples the batch;
        # on v7x dual-TC add a parallel output-row-block axis when sizes allow.
        out_flat = pl.pallas_call(
            functools.partial(_fused_kernel, H2=H2, W2=W2, Wp=Wp, L=L,
                              inv_count=inv_count, eps=BN_EPS, mxu_dtype=mxu_dtype),
            grid=(2, N),
            in_specs=[
                # x only needed in phase 0; constant index in phase 1 avoids refetch.
                pl.BlockSpec((None, Cin, HW), lambda p, n: (n * (1 - p), 0, 0)),
                pl.BlockSpec((HW, Lp), lambda p, n: (0, 0)),              # upsample mat
                pl.BlockSpec((Cout, 9 * Cin), lambda p, n: (0, 0)),       # fused taps
                pl.BlockSpec((Cout, 1), lambda p, n: (0, 0)),             # conv bias
                pl.BlockSpec((Cout, 1), lambda p, n: (0, 0)),             # gamma
                pl.BlockSpec((Cout, 1), lambda p, n: (0, 0)),             # beta
            ],
            # Written only in phase 1; index p*n keeps output-block visits monotone
            # so no partially-written block is ever flushed to HBM.
            out_specs=pl.BlockSpec((None, Cout, L2), lambda p, n: (p * n, 0, 0)),
            out_shape=jax.ShapeDtypeStruct((N, Cout, L2), jnp.float32),
            scratch_shapes=[
                pltpu.VMEM((N, Cout, L2), jnp.float32),   # pre-BN activations
                pltpu.VMEM((Cout, 2), jnp.float32),       # (sum, sum_sq) accumulator
            ],
            compiler_params=pltpu.CompilerParams(
                dimension_semantics=("arbitrary", "arbitrary"),
                vmem_limit_bytes=vmem_limit),
        )(x_flat, upmat, w_flat, b2, g2, bt2)
    else:
        # Fallback: intermediate bounces through HBM, stored as bf16.
        pre, stats = pl.pallas_call(
            functools.partial(_conv_stats_kernel, H2=H2, W2=W2, Wp=Wp, L=L,
                              mxu_dtype=mxu_dtype),
            grid=(N,),
            in_specs=[
                pl.BlockSpec((None, Cin, HW), lambda n: (n, 0, 0)),
                pl.BlockSpec((HW, Lp), lambda n: (0, 0)),
                pl.BlockSpec((Cout, 9 * Cin), lambda n: (0, 0)),
                pl.BlockSpec((Cout, 1), lambda n: (0, 0)),
            ],
            out_specs=[
                pl.BlockSpec((None, Cout, L2), lambda n: (n, 0, 0)),
                pl.BlockSpec((None, Cout, 2), lambda n: (n, 0, 0)),
            ],
            out_shape=[
                jax.ShapeDtypeStruct((N, Cout, L2), jnp.bfloat16),
                jax.ShapeDtypeStruct((N, Cout, 2), jnp.float32),
            ],
            compiler_params=pltpu.CompilerParams(
                dimension_semantics=("parallel",), vmem_limit_bytes=vmem_limit),
        )(x_flat, upmat, w_flat, b2)

        out_flat = pl.pallas_call(
            functools.partial(_bn_relu_kernel, inv_count=inv_count, eps=BN_EPS),
            grid=(N,),
            in_specs=[
                pl.BlockSpec((N, Cout, 2), lambda n: (0, 0, 0)),          # all stats
                pl.BlockSpec((Cout, 1), lambda n: (0, 0)),                # gamma
                pl.BlockSpec((Cout, 1), lambda n: (0, 0)),                # beta
                pl.BlockSpec((None, Cout, L2), lambda n: (n, 0, 0)),      # pre (bf16)
            ],
            out_specs=pl.BlockSpec((None, Cout, L2), lambda n: (n, 0, 0)),
            out_shape=jax.ShapeDtypeStruct((N, Cout, L2), jnp.float32),
            compiler_params=pltpu.CompilerParams(
                dimension_semantics=("parallel",), vmem_limit_bytes=vmem_limit),
        )(stats, g2, bt2, pre)

    # Free row-major reshape (junk columns were already dropped in-kernel).
    return out_flat.reshape(N, Cout, H2, W2)


def _reference_forward(x, w, b, gamma, beta):
    """Pure-JAX reference with identical forward semantics (for self-check)."""
    N, Cin, H, W = x.shape
    H2, W2 = 2 * H, 2 * W
    Uh = jnp.asarray(_bilinear_up_matrix_padded(H, H2)[1:-1, :])   # (H2, H)
    Uw = jnp.asarray(_bilinear_up_matrix_padded(W, W2)[1:-1, :])   # (W2, W)
    up = jnp.einsum('ph,nchw,qw->ncpq', Uh, x, Uw,
                    precision=lax.Precision.HIGHEST)
    y = lax.conv_general_dilated(up, w, window_strides=(1, 1),
                                 padding=((1, 1), (1, 1)),
                                 dimension_numbers=('NCHW', 'OIHW', 'NCHW'),
                                 precision=lax.Precision.HIGHEST)
    y = y + b[None, :, None, None]
    mean = jnp.mean(y, axis=(0, 2, 3), keepdims=True)
    var = jnp.mean(jnp.square(y - mean), axis=(0, 2, 3), keepdims=True)
    y = (y - mean) * lax.rsqrt(var + BN_EPS)
    y = y * gamma[None, :, None, None] + beta[None, :, None, None]
    return jnp.maximum(y, 0.0)


if __name__ == "__main__":
    N, Cin, Cout, H, W = 2, 4, 8, 16, 16

    key = jax.random.PRNGKey(0)
    kx, kw, kb = jax.random.split(key, 3)

    x = jax.random.normal(kx, (N, Cin, H, W), dtype=jnp.float32)

    # Deterministic, PyTorch-like conv init (uniform(-1/sqrt(fan_in), 1/sqrt(fan_in))).
    fan_in = Cin * 3 * 3
    bound = 1.0 / float(np.sqrt(fan_in))
    w = jax.random.uniform(kw, (Cout, Cin, 3, 3), minval=-bound, maxval=bound,
                           dtype=jnp.float32)
    b = jax.random.uniform(kb, (Cout,), minval=-bound, maxval=bound, dtype=jnp.float32)
    gamma = jnp.ones((Cout,), jnp.float32)   # BatchNorm2d default init
    beta = jnp.zeros((Cout,), jnp.float32)

    fused_bf16 = jax.jit(up_conv_forward)                               # default path
    two_phase_bf16 = jax.jit(functools.partial(up_conv_forward,
                                               max_fused_pre_bytes=0))  # HBM fallback
    fused_f32 = jax.jit(functools.partial(up_conv_forward,
                                          mxu_dtype=jnp.float32))       # f32 anchor

    out = fused_bf16(x, w, b, gamma, beta)
    out_two = two_phase_bf16(x, w, b, gamma, beta)
    out_f32 = fused_f32(x, w, b, gamma, beta)
    jax.block_until_ready((out, out_two, out_f32))

    assert out.shape == (N, Cout, 2 * H, 2 * W)
    assert bool(jnp.all(jnp.isfinite(out)))

    ref = _reference_forward(x, w, b, gamma, beta)
    err_f32 = float(jnp.max(jnp.abs(out_f32 - ref)))
    err_bf16 = float(jnp.max(jnp.abs(out - ref)))
    err_two = float(jnp.max(jnp.abs(out_two - ref)))
    err_paths = float(jnp.max(jnp.abs(out - out_two)))
    assert err_f32 < 5e-2, f"f32 path mismatch vs reference: {err_f32}"
    assert err_bf16 < 1e-1, f"bf16 fused path mismatch vs reference: {err_bf16}"
    assert err_two < 1e-1, f"bf16 two-phase path mismatch vs reference: {err_two}"
    assert err_paths < 5e-2, f"fused vs two-phase disagreement: {err_paths}"

    print("KERNEL_OK")
</pallas_src>

<mosaic_0001>
module attributes {stable_mosaic.version = 11 : i64} {
  func.func @_fused_kernel(%arg0: i32, %arg1: i32, %arg2: memref<1x4x256xbf16, #tpu.memory_space<vmem>>, %arg3: memref<256x1158xbf16, #tpu.memory_space<vmem>>, %arg4: memref<8x36xbf16, #tpu.memory_space<vmem>>, %arg5: memref<8x1xf32, #tpu.memory_space<vmem>>, %arg6: memref<8x1xf32, #tpu.memory_space<vmem>>, %arg7: memref<8x1xf32, #tpu.memory_space<vmem>>, %arg8: memref<1x8x1024xf32, #tpu.memory_space<vmem>>, %arg9: memref<2x8x1024xf32, #tpu.memory_space<vmem>>, %arg10: memref<8x2xf32, #tpu.memory_space<vmem>>) attributes {dimension_semantics = [#tpu.dimension_semantics<arbitrary>, #tpu.dimension_semantics<arbitrary>], iteration_bounds = array<i64: 2, 2>, scalar_prefetch = 0 : i64, scratch_operands = 2 : i64, tpu.core_type = #tpu.core_type<tc>, window_params = [{transform_indices = @transform_0, window_bounds = array<i64: 1, 4, 256>}, {pipeline_mode = #tpu.pipeline_mode<synchronous>, transform_indices = @transform_1, window_bounds = array<i64: 256, 1158>}, {pipeline_mode = #tpu.pipeline_mode<synchronous>, transform_indices = @transform_2, window_bounds = array<i64: 8, 36>}, {pipeline_mode = #tpu.pipeline_mode<synchronous>, transform_indices = @transform_3, window_bounds = array<i64: 8, 1>}, {pipeline_mode = #tpu.pipeline_mode<synchronous>, transform_indices = @transform_4, window_bounds = array<i64: 8, 1>}, {pipeline_mode = #tpu.pipeline_mode<synchronous>, transform_indices = @transform_5, window_bounds = array<i64: 8, 1>}, {transform_indices = @transform_6, window_bounds = array<i64: 1, 8, 1024>}]} {
    %c0_i32 = arith.constant 0 : i32
    %0 = arith.cmpi eq, %arg0, %c0_i32 : i32
    %c0_i32_0 = arith.constant 0 : i32
    %1 = arith.cmpi eq, %arg1, %c0_i32_0 : i32
    %2 = arith.andi %0, %1 : i1
    %3 = arith.extui %2 : i1 to i32
    %c0_i32_1 = arith.constant 0 : i32
    %4 = arith.cmpi ne, %3, %c0_i32_1 : i32
    scf.if %4 {
      %cst = arith.constant 0.000000e+00 : f32
      %11 = vector.broadcast %cst : f32 to vector<8x2xf32>
      %c0 = arith.constant 0 : index
      %c0_5 = arith.constant 0 : index
      %12 = vector.load %arg10[%c0, %c0_5] : memref<8x2xf32, #tpu.memory_space<vmem>>, vector<8x2xf32>
      tpu.vector_store %arg10[%c0, %c0_5], %11 {strides = array<i32>} : memref<8x2xf32, #tpu.memory_space<vmem>>, vector<8x2xf32>,
    } else {
    }
    %c0_i32_2 = arith.constant 0 : i32
    %5 = arith.cmpi eq, %arg0, %c0_i32_2 : i32
    %6 = arith.extui %5 : i1 to i32
    %c0_i32_3 = arith.constant 0 : i32
    %7 = arith.cmpi ne, %6, %c0_i32_3 : i32
    scf.if %7 {
      %c0 = arith.constant 0 : index
      %c0_5 = arith.constant 0 : index
      %c0_6 = arith.constant 0 : index
      %11 = vector.load %arg2[%c0, %c0_5, %c0_6] : memref<1x4x256xbf16, #tpu.memory_space<vmem>>, vector<1x4x256xbf16>
      %12 = vector.shape_cast %11 : vector<1x4x256xbf16> to vector<4x256xbf16>
      %c0_7 = arith.constant 0 : index
      %c0_8 = arith.constant 0 : index
      %13 = vector.load %arg3[%c0_7, %c0_8] : memref<256x1158xbf16, #tpu.memory_space<vmem>>, vector<256x1158xbf16>
      %c0_9 = arith.constant 0 : index
      %c0_10 = arith.constant 0 : index
      %14 = vector.load %arg4[%c0_9, %c0_10] : memref<8x36xbf16, #tpu.memory_space<vmem>>, vector<8x36xbf16>
      %c0_11 = arith.constant 0 : index
      %c0_12 = arith.constant 0 : index
      %15 = vector.load %arg5[%c0_11, %c0_12] : memref<8x1xf32, #tpu.memory_space<vmem>>, vector<8x1xf32>
      %cst = arith.constant dense<0.000000e+00> : vector<4x1158xf32>
      %16 = tpu.matmul %12, %13, %cst {dimension_numbers = #tpu.dot_dimension_numbers<[1], [0], [0], [1], [0, 0, 1, 1], [], []>} : vector<4x256xbf16>, vector<256x1158xbf16>, vector<4x1158xf32> -> vector<4x1158xf32>
      %17 = arith.truncf %16 : vector<4x1158xf32> to vector<4x1158xbf16>
      %18 = vector.extract_strided_slice %17 {offsets = [0, 0], sizes = [4, 1088], strides = [1, 1]} : vector<4x1158xbf16> to vector<4x1088xbf16>
      %19 = vector.extract_strided_slice %17 {offsets = [0, 1], sizes = [4, 1088], strides = [1, 1]} : vector<4x1158xbf16> to vector<4x1088xbf16>
      %20 = vector.extract_strided_slice %17 {offsets = [0, 2], sizes = [4, 1088], strides = [1, 1]} : vector<4x1158xbf16> to vector<4x1088xbf16>
      %21 = vector.extract_strided_slice %17 {offsets = [0, 34], sizes = [4, 1088], strides = [1, 1]} : vector<4x1158xbf16> to vector<4x1088xbf16>
      %22 = vector.extract_strided_slice %17 {offsets = [0, 35], sizes = [4, 1088], strides = [1, 1]} : vector<4x1158xbf16> to vector<4x1088xbf16>
      %23 = vector.extract_strided_slice %17 {offsets = [0, 36], sizes = [4, 1088], strides = [1, 1]} : vector<4x1158xbf16> to vector<4x1088xbf16>
      %24 = vector.extract_strided_slice %17 {offsets = [0, 68], sizes = [4, 1088], strides = [1, 1]} : vector<4x1158xbf16> to vector<4x1088xbf16>
      %25 = vector.extract_strided_slice %17 {offsets = [0, 69], sizes = [4, 1088], strides = [1, 1]} : vector<4x1158xbf16> to vector<4x1088xbf16>
      %26 = vector.extract_strided_slice %17 {offsets = [0, 70], sizes = [4, 1088], strides = [1, 1]} : vector<4x1158xbf16> to vector<4x1088xbf16>
      %27 = tpu.concatenate %18, %19, %20, %21, %22, %23, %24, %25, %26 in 0 : vector<4x1088xbf16>, vector<4x1088xbf16>, vector<4x1088xbf16>, vector<4x1088xbf16>, vector<4x1088xbf16>, vector<4x1088xbf16>, vector<4x1088xbf16>, vector<4x1088xbf16>, vector<4x1088xbf16> -> vector<36x1088xbf16>
      %cst_13 = arith.constant dense<0.000000e+00> : vector<8x1088xf32>
      %28 = tpu.matmul %14, %27, %cst_13 {dimension_numbers = #tpu.dot_dimension_numbers<[1], [0], [0], [1], [0, 0, 1, 1], [], []>} : vector<8x36xbf16>, vector<36x1088xbf16>, vector<8x1088xf32> -> vector<8x1088xf32>
      %29 = vector.extract_strided_slice %28 {offsets = [0, 0], sizes = [8, 32], strides = [1, 1]} : vector<8x1088xf32> to vector<8x32xf32>
      %30 = vector.extract_strided_slice %28 {offsets = [0, 34], sizes = [8, 32], strides = [1, 1]} : vector<8x1088xf32> to vector<8x32xf32>
      %31 = vector.extract_strided_slice %28 {offsets = [0, 68], sizes = [8, 32], strides = [1, 1]} : vector<8x1088xf32> to vector<8x32xf32>
      %32 = vector.extract_strided_slice %28 {offsets = [0, 102], sizes = [8, 32], strides = [1, 1]} : vector<8x1088xf32> to vector<8x32xf32>
      %33 = vector.extract_strided_slice %28 {offsets = [0, 136], sizes = [8, 32], strides = [1, 1]} : vector<8x1088xf32> to vector<8x32xf32>
      %34 = vector.extract_strided_slice %28 {offsets = [0, 170], sizes = [8, 32], strides = [1, 1]} : vector<8x1088xf32> to vector<8x32xf32>
      %35 = vector.extract_strided_slice %28 {offsets = [0, 204], sizes = [8, 32], strides = [1, 1]} : vector<8x1088xf32> to vector<8x32xf32>
      %36 = vector.extract_strided_slice %28 {offsets = [0, 238], sizes = [8, 32], strides = [1, 1]} : vector<8x1088xf32> to vector<8x32xf32>
      %37 = vector.extract_strided_slice %28 {offsets = [0, 272], sizes = [8, 32], strides = [1, 1]} : vector<8x1088xf32> to vector<8x32xf32>
      %38 = vector.extract_strided_slice %28 {offsets = [0, 306], sizes = [8, 32], strides = [1, 1]} : vector<8x1088xf32> to vector<8x32xf32>
      %39 = vector.extract_strided_slice %28 {offsets = [0, 340], sizes = [8, 32], strides = [1, 1]} : vector<8x1088xf32> to vector<8x32xf32>
      %40 = vector.extract_strided_slice %28 {offsets = [0, 374], sizes = [8, 32], strides = [1, 1]} : vector<8x1088xf32> to vector<8x32xf32>
      %41 = vector.extract_strided_slice %28 {offsets = [0, 408], sizes = [8, 32], strides = [1, 1]} : vector<8x1088xf32> to vector<8x32xf32>
      %42 = vector.extract_strided_slice %28 {offsets = [0, 442], sizes = [8, 32], strides = [1, 1]} : vector<8x1088xf32> to vector<8x32xf32>
      %43 = vector.extract_strided_slice %28 {offsets = [0, 476], sizes = [8, 32], strides = [1, 1]} : vector<8x1088xf32> to vector<8x32xf32>
      %44 = vector.extract_strided_slice %28 {offsets = [0, 510], sizes = [8, 32], strides = [1, 1]} : vector<8x1088xf32> to vector<8x32xf32>
      %45 = vector.extract_strided_slice %28 {offsets = [0, 544], sizes = [8, 32], strides = [1, 1]} : vector<8x1088xf32> to vector<8x32xf32>
      %46 = vector.extract_strided_slice %28 {offsets = [0, 578], sizes = [8, 32], strides = [1, 1]} : vector<8x1088xf32> to vector<8x32xf32>
      %47 = vector.extract_strided_slice %28 {offsets = [0, 612], sizes = [8, 32], strides = [1, 1]} : vector<8x1088xf32> to vector<8x32xf32>
      %48 = vector.extract_strided_slice %28 {offsets = [0, 646], sizes = [8, 32], strides = [1, 1]} : vector<8x1088xf32> to vector<8x32xf32>
      %49 = vector.extract_strided_slice %28 {offsets = [0, 680], sizes = [8, 32], strides = [1, 1]} : vector<8x1088xf32> to vector<8x32xf32>
      %50 = vector.extract_strided_slice %28 {offsets = [0, 714], sizes = [8, 32], strides = [1, 1]} : vector<8x1088xf32> to vector<8x32xf32>
      %51 = vector.extract_strided_slice %28 {offsets = [0, 748], sizes = [8, 32], strides = [1, 1]} : vector<8x1088xf32> to vector<8x32xf32>
      %52 = vector.extract_strided_slice %28 {offsets = [0, 782], sizes = [8, 32], strides = [1, 1]} : vector<8x1088xf32> to vector<8x32xf32>
      %53 = vector.extract_strided_slice %28 {offsets = [0, 816], sizes = [8, 32], strides = [1, 1]} : vector<8x1088xf32> to vector<8x32xf32>
      %54 = vector.extract_strided_slice %28 {offsets = [0, 850], sizes = [8, 32], strides = [1, 1]} : vector<8x1088xf32> to vector<8x32xf32>
      %55 = vector.extract_strided_slice %28 {offsets = [0, 884], sizes = [8, 32], strides = [1, 1]} : vector<8x1088xf32> to vector<8x32xf32>
      %56 = vector.extract_strided_slice %28 {offsets = [0, 918], sizes = [8, 32], strides = [1, 1]} : vector<8x1088xf32> to vector<8x32xf32>
      %57 = vector.extract_strided_slice %28 {offsets = [0, 952], sizes = [8, 32], strides = [1, 1]} : vector<8x1088xf32> to vector<8x32xf32>
      %58 = vector.extract_strided_slice %28 {offsets = [0, 986], sizes = [8, 32], strides = [1, 1]} : vector<8x1088xf32> to vector<8x32xf32>
      %59 = vector.extract_strided_slice %28 {offsets = [0, 1020], sizes = [8, 32], strides = [1, 1]} : vector<8x1088xf32> to vector<8x32xf32>
      %60 = vector.extract_strided_slice %28 {offsets = [0, 1054], sizes = [8, 32], strides = [1, 1]} : vector<8x1088xf32> to vector<8x32xf32>
      %61 = tpu.concatenate %29, %30, %31, %32, %33, %34, %35, %36, %37, %38, %39, %40, %41, %42, %43, %44 in 1 : vector<8x32xf32>, vector<8x32xf32>, vector<8x32xf32>, vector<8x32xf32>, vector<8x32xf32>, vector<8x32xf32>, vector<8x32xf32>, vector<8x32xf32>, vector<8x32xf32>, vector<8x32xf32>, vector<8x32xf32>, vector<8x32xf32>, vector<8x32xf32>, vector<8x32xf32>, vector<8x32xf32>, vector<8x32xf32> -> vector<8x512xf32>
      %62 = tpu.concatenate %45, %46, %47, %48, %49, %50, %51, %52, %53, %54, %55, %56, %57, %58, %59, %60 in 1 : vector<8x32xf32>, vector<8x32xf32>, vector<8x32xf32>, vector<8x32xf32>, vector<8x32xf32>, vector<8x32xf32>, vector<8x32xf32>, vector<8x32xf32>, vector<8x32xf32>, vector<8x32xf32>, vector<8x32xf32>, vector<8x32xf32>, vector<8x32xf32>, vector<8x32xf32>, vector<8x32xf32>, vector<8x32xf32> -> vector<8x512xf32>
      %63 = tpu.concatenate %61, %62 in 1 : vector<8x512xf32>, vector<8x512xf32> -> vector<8x1024xf32>
      %64 = vector.broadcast %15 : vector<8x1xf32> to vector<8x1024xf32>
      %65 = arith.addf %63, %64 : vector<8x1024xf32>
      %66 = arith.index_cast %arg1 : i32 to index
      %c0_14 = arith.constant 0 : index
      %c0_15 = arith.constant 0 : index
      %67 = vector.load %arg9[%66, %c0_14, %c0_15] : memref<2x8x1024xf32, #tpu.memory_space<vmem>>, vector<1x8x1024xf32>
      %68 = vector.shape_cast %67 : vector<1x8x1024xf32> to vector<8x1024xf32>
      %69 = vector.shape_cast %65 : vector<8x1024xf32> to vector<1x8x1024xf32>
      tpu.vector_store %arg9[%66, %c0_14, %c0_15], %69 {strides = array<i32>} : memref<2x8x1024xf32, #tpu.memory_space<vmem>>, vector<1x8x1024xf32>,
      %cst_16 = arith.constant dense<0.000000e+00> : vector<8xf32>
      %70 = vector.multi_reduction <add>, %65, %cst_16 [1] : vector<8x1024xf32> to vector<8xf32>
      %71 = vector.shape_cast %70 : vector<8xf32> to vector<8x1xf32>
      %72 = arith.mulf %65, %65 : vector<8x1024xf32>
      %cst_17 = arith.constant dense<0.000000e+00> : vector<8xf32>
      %73 = vector.multi_reduction <add>, %72, %cst_17 [1] : vector<8x1024xf32> to vector<8xf32>
      %74 = vector.shape_cast %73 : vector<8xf32> to vector<8x1xf32>
      %c0_18 = arith.constant 0 : index
      %c0_19 = arith.constant 0 : index
      %75 = vector.load %arg10[%c0_18, %c0_19] : memref<8x2xf32, #tpu.memory_space<vmem>>, vector<8x2xf32>
      %76 = tpu.concatenate %71, %74 in 1 : vector<8x1xf32>, vector<8x1xf32> -> vector<8x2xf32>
      %77 = arith.addf %75, %76 : vector<8x2xf32>
      %c0_20 = arith.constant 0 : index
      %c0_21 = arith.constant 0 : index
      %78 = vector.load %arg10[%c0_20, %c0_21] : memref<8x2xf32, #tpu.memory_space<vmem>>, vector<8x2xf32>
      tpu.vector_store %arg10[%c0_20, %c0_21], %77 {strides = array<i32>} : memref<8x2xf32, #tpu.memory_space<vmem>>, vector<8x2xf32>,
    } else {
    }
    %c1_i32 = arith.constant 1 : i32
    %8 = arith.cmpi eq, %arg0, %c1_i32 : i32
    %9 = arith.extui %8 : i1 to i32
    %c0_i32_4 = arith.constant 0 : i32
    %10 = arith.cmpi ne, %9, %c0_i32_4 : i32
    scf.if %10 {
      %c0 = arith.constant 0 : index
      %c0_5 = arith.constant 0 : index
      %11 = vector.load %arg10[%c0, %c0_5] : memref<8x2xf32, #tpu.memory_space<vmem>>, vector<8x2xf32>
      %c0_6 = arith.constant 0 : index
      %c0_7 = arith.constant 0 : index
      %12 = vector.load %arg6[%c0_6, %c0_7] : memref<8x1xf32, #tpu.memory_space<vmem>>, vector<8x1xf32>
      %c0_8 = arith.constant 0 : index
      %c0_9 = arith.constant 0 : index
      %13 = vector.load %arg7[%c0_8, %c0_9] : memref<8x1xf32, #tpu.memory_space<vmem>>, vector<8x1xf32>
      %14 = vector.extract_strided_slice %11 {offsets = [0, 0], sizes = [8, 1], strides = [1, 1]} : vector<8x2xf32> to vector<8x1xf32>
      %cst = arith.constant 4.8828125E-4 : f32
      %15 = vector.broadcast %cst : f32 to vector<8x1xf32>
      %16 = arith.mulf %14, %15 : vector<8x1xf32>
      %17 = vector.extract_strided_slice %11 {offsets = [0, 1], sizes = [8, 1], strides = [1, 1]} : vector<8x2xf32> to vector<8x1xf32>
      %cst_10 = arith.constant 4.8828125E-4 : f32
      %18 = vector.broadcast %cst_10 : f32 to vector<8x1xf32>
      %19 = arith.mulf %17, %18 : vector<8x1xf32>
      %20 = arith.mulf %16, %16 : vector<8x1xf32>
      %21 = arith.subf %19, %20 : vector<8x1xf32>
      %cst_11 = arith.constant 0.000000e+00 : f32
      %22 = vector.broadcast %cst_11 : f32 to vector<8x1xf32>
      %23 = arith.maximumf %21, %22 : vector<8x1xf32>
      %cst_12 = arith.constant 9.99999974E-6 : f32
      %24 = vector.broadcast %cst_12 : f32 to vector<8x1xf32>
      %25 = arith.addf %23, %24 : vector<8x1xf32>
      %26 = math.rsqrt %25 : vector<8x1xf32>
      %27 = arith.mulf %12, %26 : vector<8x1xf32>
      %28 = arith.mulf %16, %27 : vector<8x1xf32>
      %29 = arith.subf %13, %28 : vector<8x1xf32>
      %30 = arith.index_cast %arg1 : i32 to index
      %c0_13 = arith.constant 0 : index
      %c0_14 = arith.constant 0 : index
      %31 = vector.load %arg9[%30, %c0_13, %c0_14] : memref<2x8x1024xf32, #tpu.memory_space<vmem>>, vector<1x8x1024xf32>
      %32 = vector.shape_cast %31 : vector<1x8x1024xf32> to vector<8x1024xf32>
      %33 = vector.broadcast %27 : vector<8x1xf32> to vector<8x1024xf32>
      %34 = arith.mulf %32, %33 : vector<8x1024xf32>
      %35 = vector.broadcast %29 : vector<8x1xf32> to vector<8x1024xf32>
      %36 = arith.addf %34, %35 : vector<8x1024xf32>
      %cst_15 = arith.constant 0.000000e+00 : f32
      %37 = vector.broadcast %cst_15 : f32 to vector<8x1024xf32>
      %38 = arith.maximumf %36, %37 : vector<8x1024xf32>
      %c0_16 = arith.constant 0 : index
      %c0_17 = arith.constant 0 : index
      %c0_18 = arith.constant 0 : index
      %39 = vector.load %arg8[%c0_16, %c0_17, %c0_18] : memref<1x8x1024xf32, #tpu.memory_space<vmem>>, vector<1x8x1024xf32>
      %40 = vector.shape_cast %39 : vector<1x8x1024xf32> to vector<8x1024xf32>
      %41 = vector.shape_cast %38 : vector<8x1024xf32> to vector<1x8x1024xf32>
      tpu.vector_store %arg8[%c0_16, %c0_17, %c0_18], %41 {strides = array<i32>} : memref<1x8x1024xf32, #tpu.memory_space<vmem>>, vector<1x8x1024xf32>,
    } else {
    }
    return
  }
  func.func @transform_0(%arg0: i32, %arg1: i32) -> (i32, i32, i32) {
    %c1_i32 = arith.constant 1 : i32
    %0 = arith.subi %c1_i32, %arg0 : i32
    %1 = arith.muli %arg1, %0 : i32
    %c0_i32 = arith.constant 0 : i32
    %c0_i32_0 = arith.constant 0 : i32
    %c0_i32_1 = arith.constant 0 : i32
    return %1, %c0_i32, %c0_i32_0 : i32, i32, i32
  }
  func.func @transform_1(%arg0: i32, %arg1: i32) -> (i32, i32) {
    %c0_i32 = arith.constant 0 : i32
    %c0_i32_0 = arith.constant 0 : i32
    %c0_i32_1 = arith.constant 0 : i32
    return %c0_i32, %c0_i32_0 : i32, i32
  }
  func.func @transform_2(%arg0: i32, %arg1: i32) -> (i32, i32) {
    %c0_i32 = arith.constant 0 : i32
    %c0_i32_0 = arith.constant 0 : i32
    %c0_i32_1 = arith.constant 0 : i32
    return %c0_i32, %c0_i32_0 : i32, i32
  }
  func.func @transform_3(%arg0: i32, %arg1: i32) -> (i32, i32) {
    %c0_i32 = arith.constant 0 : i32
    %c0_i32_0 = arith.constant 0 : i32
    %c0_i32_1 = arith.constant 0 : i32
    return %c0_i32, %c0_i32_0 : i32, i32
  }
  func.func @transform_4(%arg0: i32, %arg1: i32) -> (i32, i32) {
    %c0_i32 = arith.constant 0 : i32
    %c0_i32_0 = arith.constant 0 : i32
    %c0_i32_1 = arith.constant 0 : i32
    return %c0_i32, %c0_i32_0 : i32, i32
  }
  func.func @transform_5(%arg0: i32, %arg1: i32) -> (i32, i32) {
    %c0_i32 = arith.constant 0 : i32
    %c0_i32_0 = arith.constant 0 : i32
    %c0_i32_1 = arith.constant 0 : i32
    return %c0_i32, %c0_i32_0 : i32, i32
  }
  func.func @transform_6(%arg0: i32, %arg1: i32) -> (i32, i32, i32) {
    %0 = arith.muli %arg0, %arg1 : i32
    %c0_i32 = arith.constant 0 : i32
    %c0_i32_0 = arith.constant 0 : i32
    %c0_i32_1 = arith.constant 0 : i32
    return %0, %c0_i32, %c0_i32_0 : i32, i32, i32
  }
}

</mosaic_0001>

<llo_original>
// kernel: up_conv_forward.1
$region0: #{up_conv_forward.1}
  #allocation0 [shape = 'u32[]', space=smem, size = 0x4, offset = 0x4, fixed_abs, tag = 'smem constant byte address 0x4 - core index']
  #allocation1 [shape = 'u32[144,128]{1,0:T(1,128)}', space=vmem, size = 0x12000, scoped, tag = 'internal scratch']
  #allocation2 [shape = 'f32[2,8,1024]{2,1,0:T(8,128)}', space=vmem, size = 0x10000, scoped, tag = 'scratch operand']
  #allocation3 [shape = 'f32[8,2]{1,0:T(8,128)}', space=vmem, size = 0x1000, scoped, tag = 'scratch operand']
  %s0 = inlined_call_operand.vmem [shape: bf16[2,4,256], index: 0, kind: input, shape index: {}]
  %s1 = inlined_call_operand.vmem [shape: bf16[256,1158], index: 1, kind: input, shape index: {}]
  %s2 = inlined_call_operand.vmem [shape: bf16[8,36], index: 2, kind: input, shape index: {}]
  %s3 = inlined_call_operand.vmem [shape: f32[8,1], index: 3, kind: input, shape index: {}]
  %s4 = inlined_call_operand.vmem [shape: f32[8,1], index: 4, kind: input, shape index: {}]
  %s5 = inlined_call_operand.vmem [shape: f32[8,1], index: 5, kind: input, shape index: {}]
  %s6 = inlined_call_operand.vmem [shape: f32[2,8,1024], index: 6, kind: output, shape index: {}]
  %s7 = sld [smem:[#allocation0]]
  $region69: #{up_conv_forward.1} parent=0
    _
  %s9 = ssub.s32 1, %s7
  %s10 = scalar_select 0, %s9, %s7
  loop: start=0, step=1, limit=6
  $region2: #{up_conv_forward.1} parent=0 // loop_pre_header
    _
  $region3: #{up_conv_forward.1} parent=0 // loop_header
    %s12 = sphi 0, %s16
    %p13 = scmp.ge.s32.totalorder %s12, 6
    %s19 = sphi 0, %s31
    %s20 = sphi 0, %s27
    %s21 = sphi 0, %s19
    %s22 = sphi 0, %s20
    %s23 = sphi 0, %s21
    %s24 = sphi 0, %s22
    %s38 = sphi 0, %s40
    %s41 = sphi 0, %s38
    %s42 = sphi 0, %s41
    %s58 = sphi 0, %s42
    %s62 = sphi 0, %s62
    %s64 = sphi 0, %s62
    %s65 = sphi 0, %s64
    %s79 = sphi 0, %s65
    %s83 = sphi 0, %s83
    %s85 = sphi 0, %s83
    %s86 = sphi 0, %s85
    %s100 = sphi 0, %s86
    %s104 = sphi 0, %s104
    %s106 = sphi 0, %s104
    %s107 = sphi 0, %s106
    %s121 = sphi 0, %s107
    %s125 = sphi 0, %s125
    %s127 = sphi 0, %s125
    %s128 = sphi 0, %s127
    %s142 = sphi 0, %s128
    %s146 = sphi 0, %s146
    %s148 = sphi 0, %s146
    %s149 = sphi 0, %s148
    %s163 = sphi 0, %s149
    %s171 = sphi 0, %s173
    %s174 = sphi 0, %s171
    %s175 = sphi 0, %s174
    %s191 = sphi 0, %s175
  $region4: #{up_conv_forward.1} parent=0 // loop_header_branch
    %15 = sbr.rel (%p13) target = $region8
  $region5: #{up_conv_forward.1} parent=0 // loop_body
    %s17 = ssub.s32 %s12, 1
    %s18 = ssub.s32 %s12, 2
    %s25 = sadd.s32 1, %s20
    %p26 = scmp.ge.s32.totalorder %s25, 2
    %s27 = scalar_select %p26, 0, %s25
    %s28 = sadd.s32 1, %s19
    %s29 = scalar_select %p26, %s28, %s19
    %p30 = scmp.ge.s32.totalorder %s29, 2
    %s31 = scalar_select %p30, 0, %s29
    %s32 = ssub.s32 1, %s19
    %s33 = smul.u32 %s20, %s32
    %s34 = ssub.s32 1, %s31
    %s35 = smul.u32 %s27, %s34
    %s36 = ssub.s32 %s33, %s35
    %p37 = scmp.eq.s32.totalorder %s36, 0
    %s39 = sadd.s32 %s38, 1
    %s40 = scalar_select %p37, %s38, %s39
    %p43 = pneg %p37
    %p44 = scmp.eq.s32.totalorder %s12, 3
    %p45 = por %p43, %p44
    %p46 = scmp.ne.s32.totalorder %s38, %s41
    %p47 = scmp.eq.s32.totalorder %s12, 0
    %p48 = por %p46, %p47
    %p49 = scmp.ne.s32.totalorder %s38, %s41
    %p50 = scmp.eq.s32.totalorder %s17, 3
    %p51 = por %p49, %p50
    %p52 = scmp.ne.s32.totalorder %s41, %s42
    %p53 = scmp.eq.s32.totalorder %s17, 0
    %p54 = por %p52, %p53
    %p55 = scmp.ne.s32.totalorder %s41, %s42
    %p56 = scmp.eq.s32.totalorder %s18, 3
    %p57 = por %p55, %p56
    %p59 = scmp.ne.s32.totalorder %s42, %s58
    %p60 = scmp.eq.s32.totalorder %s18, 0
    %p61 = por %p59, %p60
    %s63 = sadd.s32 %s62, 1
    %p66 = scmp.eq.s32.totalorder %s12, 3
    %p67 = scmp.ne.s32.totalorder %s62, %s64
    %p68 = scmp.eq.s32.totalorder %s12, 0
    %p69 = por %p67, %p68
    %p70 = scmp.ne.s32.totalorder %s62, %s64
    %p71 = scmp.eq.s32.totalorder %s17, 3
    %p72 = por %p70, %p71
    %p73 = scmp.ne.s32.totalorder %s64, %s65
    %p74 = scmp.eq.s32.totalorder %s17, 0
    %p75 = por %p73, %p74
    %p76 = scmp.ne.s32.totalorder %s64, %s65
    %p77 = scmp.eq.s32.totalorder %s18, 3
    %p78 = por %p76, %p77
    %p80 = scmp.ne.s32.totalorder %s65, %s79
    %p81 = scmp.eq.s32.totalorder %s18, 0
    %p82 = por %p80, %p81
    %s84 = sadd.s32 %s83, 1
    %p87 = scmp.eq.s32.totalorder %s12, 3
    %p88 = scmp.ne.s32.totalorder %s83, %s85
    %p89 = scmp.eq.s32.totalorder %s12, 0
    %p90 = por %p88, %p89
    %p91 = scmp.ne.s32.totalorder %s83, %s85
    %p92 = scmp.eq.s32.totalorder %s17, 3
    %p93 = por %p91, %p92
    %p94 = scmp.ne.s32.totalorder %s85, %s86
    %p95 = scmp.eq.s32.totalorder %s17, 0
    %p96 = por %p94, %p95
    %p97 = scmp.ne.s32.totalorder %s85, %s86
    %p98 = scmp.eq.s32.totalorder %s18, 3
    %p99 = por %p97, %p98
    %p101 = scmp.ne.s32.totalorder %s86, %s100
    %p102 = scmp.eq.s32.totalorder %s18, 0
    %p103 = por %p101, %p102
    %s105 = sadd.s32 %s104, 1
    %p108 = scmp.eq.s32.totalorder %s12, 3
    %p109 = scmp.ne.s32.totalorder %s104, %s106
    %p110 = scmp.eq.s32.totalorder %s12, 0
    %p111 = por %p109, %p110
    %p112 = scmp.ne.s32.totalorder %s104, %s106
    %p113 = scmp.eq.s32.totalorder %s17, 3
    %p114 = por %p112, %p113
    %p115 = scmp.ne.s32.totalorder %s106, %s107
    %p116 = scmp.eq.s32.totalorder %s17, 0
    %p117 = por %p115, %p116
    %p118 = scmp.ne.s32.totalorder %s106, %s107
    %p119 = scmp.eq.s32.totalorder %s18, 3
    %p120 = por %p118, %p119
    %p122 = scmp.ne.s32.totalorder %s107, %s121
    %p123 = scmp.eq.s32.totalorder %s18, 0
    %p124 = por %p122, %p123
    %s126 = sadd.s32 %s125, 1
    %p129 = scmp.eq.s32.totalorder %s12, 3
    %p130 = scmp.ne.s32.totalorder %s125, %s127
    %p131 = scmp.eq.s32.totalorder %s12, 0
    %p132 = por %p130, %p131
    %p133 = scmp.ne.s32.totalorder %s125, %s127
    %p134 = scmp.eq.s32.totalorder %s17, 3
    %p135 = por %p133, %p134
    %p136 = scmp.ne.s32.totalorder %s127, %s128
    %p137 = scmp.eq.s32.totalorder %s17, 0
    %p138 = por %p136, %p137
    %p139 = scmp.ne.s32.totalorder %s127, %s128
    %p140 = scmp.eq.s32.totalorder %s18, 3
    %p141 = por %p139, %p140
    %p143 = scmp.ne.s32.totalorder %s128, %s142
    %p144 = scmp.eq.s32.totalorder %s18, 0
    %p145 = por %p143, %p144
    %s147 = sadd.s32 %s146, 1
    %p150 = scmp.eq.s32.totalorder %s12, 3
    %p151 = scmp.ne.s32.totalorder %s146, %s148
    %p152 = scmp.eq.s32.totalorder %s12, 0
    %p153 = por %p151, %p152
    %p154 = scmp.ne.s32.totalorder %s146, %s148
    %p155 = scmp.eq.s32.totalorder %s17, 3
    %p156 = por %p154, %p155
    %p157 = scmp.ne.s32.totalorder %s148, %s149
    %p158 = scmp.eq.s32.totalorder %s17, 0
    %p159 = por %p157, %p158
    %p160 = scmp.ne.s32.totalorder %s148, %s149
    %p161 = scmp.eq.s32.totalorder %s18, 3
    %p162 = por %p160, %p161
    %p164 = scmp.ne.s32.totalorder %s149, %s163
    %p165 = scmp.eq.s32.totalorder %s18, 0
    %p166 = por %p164, %p165
    %s167 = smul.u32 %s19, %s20
    %s168 = smul.u32 %s31, %s27
    %s169 = ssub.s32 %s167, %s168
    %p170 = scmp.eq.s32.totalorder %s169, 0
    %s172 = sadd.s32 %s171, 1
    %s173 = scalar_select %p170, %s171, %s172
    %p176 = pneg %p170
    %p177 = scmp.eq.s32.totalorder %s12, 3
    %p178 = por %p176, %p177
    %p179 = scmp.ne.s32.totalorder %s171, %s174
    %p180 = scmp.eq.s32.totalorder %s12, 0
    %p181 = por %p179, %p180
    %p182 = scmp.ne.s32.totalorder %s171, %s174
    %p183 = scmp.eq.s32.totalorder %s17, 3
    %p184 = por %p182, %p183
    %p185 = scmp.ne.s32.totalorder %s174, %s175
    %p186 = scmp.eq.s32.totalorder %s17, 0
    %p187 = por %p185, %p186
    %p188 = scmp.ne.s32.totalorder %s174, %s175
    %p189 = scmp.eq.s32.totalorder %s18, 3
    %p190 = por %p188, %p189
    %p192 = scmp.ne.s32.totalorder %s175, %s191
    %p193 = scmp.eq.s32.totalorder %s18, 0
    %p194 = por %p192, %p193
    %p195 = scmp.le.s32.totalorder 1, %s12
    %p196 = scmp.lt.s32.totalorder %s12, 5
    %p197 = pnand %p195, %p196
    %p198 = pneg %p197
    // Predicated region
    $region9: #{up_conv_forward.1} parent=5 // pred_check
      _
    $region10: #{up_conv_forward.1} parent=5 // pred_check_branch
      %200 = sbr.rel (%p197) target = $region12
    $region11: #{up_conv_forward.1} parent=5 // pred_region
      %s201 = ssub.s32 %s12, 1
      // Predicated region
      $region13: #{up_conv_forward.1} parent=11 // pred_check
        %p202 = pneg %p75
      $region14: #{up_conv_forward.1} parent=11 // pred_check_branch
        %204 = sbr.rel (%p202) target = $region16
      $region15: #{up_conv_forward.1} parent=11 // pred_region
        _
      $region16: #{up_conv_forward.1} parent=11 // pred_fallthru
        _
      // Predicated region
      $region17: #{up_conv_forward.1} parent=11 // pred_check
        %p205 = pneg %p96
      $region18: #{up_conv_forward.1} parent=11 // pred_check_branch
        %207 = sbr.rel (%p205) target = $region20
      $region19: #{up_conv_forward.1} parent=11 // pred_region
        _
      $region20: #{up_conv_forward.1} parent=11 // pred_fallthru
        _
      // Predicated region
      $region21: #{up_conv_forward.1} parent=11 // pred_check
        %p208 = pneg %p117
      $region22: #{up_conv_forward.1} parent=11 // pred_check_branch
        %210 = sbr.rel (%p208) target = $region24
      $region23: #{up_conv_forward.1} parent=11 // pred_region
        _
      $region24: #{up_conv_forward.1} parent=11 // pred_fallthru
        _
      // Predicated region
      $region25: #{up_conv_forward.1} parent=11 // pred_check
        %p211 = pneg %p138
      $region26: #{up_conv_forward.1} parent=11 // pred_check_branch
        %213 = sbr.rel (%p211) target = $region28
      $region27: #{up_conv_forward.1} parent=11 // pred_region
        _
      $region28: #{up_conv_forward.1} parent=11 // pred_fallthru
        _
      // Predicated region
      $region29: #{up_conv_forward.1} parent=11 // pred_check
        %p214 = pneg %p159
      $region30: #{up_conv_forward.1} parent=11 // pred_check_branch
        %216 = sbr.rel (%p214) target = $region32
      $region31: #{up_conv_forward.1} parent=11 // pred_region
        _
      $region32: #{up_conv_forward.1} parent=11 // pred_fallthru
        _
    $region12: #{up_conv_forward.1} parent=5 // pred_fallthru
      _
    %p217 = scmp.lt.s32.totalorder %s12, 4
    // Predicated region
    $region33: #{up_conv_forward.1} parent=5 // pred_check
      %p218 = pneg %p217
    $region34: #{up_conv_forward.1} parent=5 // pred_check_branch
      %220 = sbr.rel (%p218) target = $region36
    $region35: #{up_conv_forward.1} parent=5 // pred_region
      // Predicated region
      $region37: #{up_conv_forward.1} parent=35 // pred_check
        %p221 = pneg %p48
      $region38: #{up_conv_forward.1} parent=35 // pred_check_branch
        %223 = sbr.rel (%p221) target = $region40
      $region39: #{up_conv_forward.1} parent=35 // pred_region
        %s224 = ssub.s32 1, %s19
        %s225 = smul.u32 %s20, %s224
        %p226 = scmp.lt.s32.totalorder %s225, 1
        %s227 = scalar_select %p226, %s225, 1
        %s228 = smul.addr %s227, 2
        %s229 = smul.addr %s228, 2
        %s230 = scalar_lea.vmem %s0, %s229
        %s231 = ssub.s32 1, %s19
        %s232 = smul.u32 %s20, %s231
      $region40: #{up_conv_forward.1} parent=35 // pred_fallthru
        _
    $region36: #{up_conv_forward.1} parent=5 // pred_fallthru
      _
    %p233 = scmp.le.s32.totalorder 1, %s12
    %p234 = scmp.lt.s32.totalorder %s12, 5
    %p235 = pnand %p233, %p234
    %p236 = pneg %p235
    // Predicated region
    $region41: #{up_conv_forward.1} parent=5 // pred_check
      _
    $region42: #{up_conv_forward.1} parent=5 // pred_check_branch
      %238 = sbr.rel (%p235) target = $region44
    $region43: #{up_conv_forward.1} parent=5 // pred_region
      %s239 = ssub.s32 %s12, 1
      %s240 = ssub.s32 1, %s21
      %s241 = smul.u32 %s22, %s240
      %p242 = scmp.lt.s32.totalorder %s241, 1
      %s243 = scalar_select %p242, %s241, 1
      %s244 = smul.addr %s243, 2
      %s245 = smul.addr %s244, 2
      %s246 = scalar_lea.vmem %s0, %s245
      %p247 = pneg %p54
      %p248 = pneg %p51
      %p249 = pneg %p75
      %p250 = pneg %p72
      %p251 = pneg %p96
      %p252 = pneg %p93
      %p253 = pneg %p117
      %p254 = pneg %p114
      %p255 = pneg %p138
      %p256 = pneg %p135
      %p257 = pneg %p159
      %p258 = pneg %p156
      %p259 = pneg %p187
      %p260 = pneg %p184
      %s261 = smul.u32 %s21, %s22
      %p262 = scmp.lt.s32.totalorder %s261, 1
      %s263 = scalar_select %p262, %s261, 1
      %s264 = smul.addr %s263, 8
      %s265 = smul.addr %s264, 8
      %s266 = scalar_lea.vmem %s6, %s265
      %s267 = ssub.s32 1, %s21
      %s268 = smul.u32 %s22, %s267
      %p269 = scmp.lt.s32.totalorder %s268, 1
      %s270 = scalar_select %p269, %s268, 1
      %s271 = smul.addr %s270, 2
      %s272 = smul.addr %s271, 2
      %s273 = scalar_lea.vmem %s0, %s272
      %s274 = ssub.s32 1, %s21
      %s275 = smul.u32 %s22, %s274
      %s276 = smul.u32 %s21, %s22
      %p277 = scmp.lt.s32.totalorder %s276, 1
      %s278 = scalar_select %p277, %s276, 1
      %s279 = smul.addr %s278, 8
      %s280 = smul.addr %s279, 8
      %s281 = scalar_lea.vmem %s6, %s280
      %s282 = smul.u32 %s21, %s22
      %p284 = scmp.eq.s32.totalorder %s21, 0
      %p285 = scmp.eq.s32.totalorder %s22, 0
      %p286 = pnand %p284, %p285
      %p287 = pneg %p286
      // Predicated region
      $region45: #{up_conv_forward.1} parent=43 // pred_check
        _
      $region46: #{up_conv_forward.1} parent=43 // pred_check_branch
        %289 = sbr.rel (%p286) target = $region48
      $region47: #{up_conv_forward.1} parent=43 // pred_region
        %vm290 = vcmask 15360
        %291 = vst.msk [vmem:[#allocation3] sm:$0xff] %vm290, 0.0
      $region48: #{up_conv_forward.1} parent=43 // pred_fallthru
        _
      // Predicated region
      $region49: #{up_conv_forward.1} parent=43 // pred_check
        %p292 = pneg %p284
      $region50: #{up_conv_forward.1} parent=43 // pred_check_branch
        %294 = sbr.rel (%p292) target = $region52
      $region51: #{up_conv_forward.1} parent=43 // pred_region
        %v295 = vld [vmem:[%s273] sm:$0xf]
        %v296 = vld [vmem:[%s1] sm:$0xff]
        %v297 = vld [vmem:[%s1 + $0x8] sm:$0xff]
        %v298 = vld [vmem:[%s1 + $0x10] sm:$0xff]
        %v299 = vld [vmem:[%s1 + $0x18] sm:$0xff]
        %v300 = vld [vmem:[%s1 + $0x20] sm:$0xff]
        %v301 = vld [vmem:[%s1 + $0x28] sm:$0xff]
        %v302 = vld [vmem:[%s1 + $0x30] sm:$0xff]
        %v303 = vld [vmem:[%s1 + $0x38] sm:$0xff]
        %v304 = vld [vmem:[%s1 + $0x40] sm:$0xff]
        %v305 = vld [vmem:[%s1 + $0x48] sm:$0xff]
        %v306 = vld [vmem:[%s1 + $0x50] sm:$0xff]
        %v307 = vld [vmem:[%s1 + $0x58] sm:$0xff]
        %v308 = vld [vmem:[%s1 + $0x60] sm:$0xff]
        %v309 = vld [vmem:[%s1 + $0x68] sm:$0xff]
        %v310 = vld [vmem:[%s1 + $0x70] sm:$0xff]
        %v311 = vld [vmem:[%s1 + $0x78] sm:$0xff]
        %v312 = vld [vmem:[%s1 + $0x80] sm:$0xff]
        %v313 = vld [vmem:[%s1 + $0x88] sm:$0xff]
        %v314 = vld [vmem:[%s1 + $0x90] sm:$0xff]
        %v315 = vld [vmem:[%s1 + $0x98] sm:$0xff]
        %v316 = vld [vmem:[%s1 + $0xa0] sm:$0xff]
        %v317 = vld [vmem:[%s1 + $0xa8] sm:$0xff]
        %v318 = vld [vmem:[%s1 + $0xb0] sm:$0xff]
        %v319 = vld [vmem:[%s1 + $0xb8] sm:$0xff]
        %v320 = vld [vmem:[%s1 + $0xc0] sm:$0xff]
        %v321 = vld [vmem:[%s1 + $0xc8] sm:$0xff]
        %v322 = vld [vmem:[%s1 + $0xd0] sm:$0xff]
        %v323 = vld [vmem:[%s1 + $0xd8] sm:$0xff]
        %v324 = vld [vmem:[%s1 + $0xe0] sm:$0xff]
        %v325 = vld [vmem:[%s1 + $0xe8] sm:$0xff]
        %v326 = vld [vmem:[%s1 + $0xf0] sm:$0xff]
        %v327 = vld [vmem:[%s1 + $0xf8] sm:$0xff]
        %v328 = vld [vmem:[%s1 + $0x100] sm:$0xff]
        %v329 = vld [vmem:[%s1 + $0x108] sm:$0xff]
        %v330 = vld [vmem:[%s1 + $0x110] sm:$0xff]
        %v331 = vld [vmem:[%s1 + $0x118] sm:$0xff]
        %v332 = vld [vmem:[%s1 + $0x120] sm:$0xff]
        %v333 = vld [vmem:[%s1 + $0x128] sm:$0xff]
        %v334 = vld [vmem:[%s1 + $0x130] sm:$0xff]
        %v335 = vld [vmem:[%s1 + $0x138] sm:$0xff]
        %v336 = vld [vmem:[%s1 + $0x140] sm:$0xff]
        %v337 = vld [vmem:[%s1 + $0x148] sm:$0xff]
        %v338 = vld [vmem:[%s1 + $0x150] sm:$0xff]
        %v339 = vld [vmem:[%s1 + $0x158] sm:$0xff]
        %v340 = vld [vmem:[%s1 + $0x160] sm:$0xff]
        %v341 = vld [vmem:[%s1 + $0x168] sm:$0xff]
        %v342 = vld [vmem:[%s1 + $0x170] sm:$0xff]
        %v343 = vld [vmem:[%s1 + $0x178] sm:$0xff]
        %v344 = vld [vmem:[%s1 + $0x180] sm:$0xff]
        %v345 = vld [vmem:[%s1 + $0x188] sm:$0xff]
        %v346 = vld [vmem:[%s1 + $0x190] sm:$0xff]
        %v347 = vld [vmem:[%s1 + $0x198] sm:$0xff]
        %v348 = vld [vmem:[%s1 + $0x1a0] sm:$0xff]
        %v349 = vld [vmem:[%s1 + $0x1a8] sm:$0xff]
        %v350 = vld [vmem:[%s1 + $0x1b0] sm:$0xff]
        %v351 = vld [vmem:[%s1 + $0x1b8] sm:$0xff]
        %v352 = vld [vmem:[%s1 + $0x1c0] sm:$0xff]
        %v353 = vld [vmem:[%s1 + $0x1c8] sm:$0xff]
        %v354 = vld [vmem:[%s1 + $0x1d0] sm:$0xff]
        %v355 = vld [vmem:[%s1 + $0x1d8] sm:$0xff]
        %v356 = vld [vmem:[%s1 + $0x1e0] sm:$0xff]
        %v357 = vld [vmem:[%s1 + $0x1e8] sm:$0xff]
        %v358 = vld [vmem:[%s1 + $0x1f0] sm:$0xff]
        %v359 = vld [vmem:[%s1 + $0x1f8] sm:$0xff]
        %v360 = vld [vmem:[%s1 + $0x200] sm:$0xff]
        %v361 = vld [vmem:[%s1 + $0x208] sm:$0xff]
        %v362 = vld [vmem:[%s1 + $0x210] sm:$0xff]
        %v363 = vld [vmem:[%s1 + $0x218] sm:$0xff]
        %v364 = vld [vmem:[%s1 + $0x220] sm:$0xff]
        %v365 = vld [vmem:[%s1 + $0x228] sm:$0xff]
        %v366 = vld [vmem:[%s1 + $0x230] sm:$0xff]
        %v367 = vld [vmem:[%s1 + $0x238] sm:$0xff]
        %v368 = vld [vmem:[%s1 + $0x240] sm:$0xff]
        %v369 = vld [vmem:[%s1 + $0x248] sm:$0xff]
        %v370 = vld [vmem:[%s1 + $0x250] sm:$0xff]
        %v371 = vld [vmem:[%s1 + $0x258] sm:$0xff]
        %v372 = vld [vmem:[%s1 + $0x260] sm:$0xff]
        %v373 = vld [vmem:[%s1 + $0x268] sm:$0xff]
        %v374 = vld [vmem:[%s1 + $0x270] sm:$0xff]
        %v375 = vld [vmem:[%s1 + $0x278] sm:$0xff]
        %v376 = vld [vmem:[%s1 + $0x280] sm:$0xff]
        %v377 = vld [vmem:[%s1 + $0x288] sm:$0xff]
        %v378 = vld [vmem:[%s1 + $0x290] sm:$0xff]
        %v379 = vld [vmem:[%s1 + $0x298] sm:$0xff]
        %v380 = vld [vmem:[%s1 + $0x2a0] sm:$0xff]
        %v381 = vld [vmem:[%s1 + $0x2a8] sm:$0xff]
        %v382 = vld [vmem:[%s1 + $0x2b0] sm:$0xff]
        %v383 = vld [vmem:[%s1 + $0x2b8] sm:$0xff]
        %v384 = vld [vmem:[%s1 + $0x2c0] sm:$0xff]
        %v385 = vld [vmem:[%s1 + $0x2c8] sm:$0xff]
        %v386 = vld [vmem:[%s1 + $0x2d0] sm:$0xff]
        %v387 = vld [vmem:[%s1 + $0x2d8] sm:$0xff]
        %v388 = vld [vmem:[%s1 + $0x2e0] sm:$0xff]
        %v389 = vld [vmem:[%s1 + $0x2e8] sm:$0xff]
        %v390 = vld [vmem:[%s1 + $0x2f0] sm:$0xff]
        %v391 = vld [vmem:[%s1 + $0x2f8] sm:$0xff]
        %v392 = vld [vmem:[%s1 + $0x300] sm:$0xff]
        %v393 = vld [vmem:[%s1 + $0x308] sm:$0xff]
        %v394 = vld [vmem:[%s1 + $0x310] sm:$0xff]
        %v395 = vld [vmem:[%s1 + $0x318] sm:$0xff]
        %v396 = vld [vmem:[%s1 + $0x320] sm:$0xff]
        %v397 = vld [vmem:[%s1 + $0x328] sm:$0xff]
        %v398 = vld [vmem:[%s1 + $0x330] sm:$0xff]
        %v399 = vld [vmem:[%s1 + $0x338] sm:$0xff]
        %v400 = vld [vmem:[%s1 + $0x340] sm:$0xff]
        %v401 = vld [vmem:[%s1 + $0x348] sm:$0xff]
        %v402 = vld [vmem:[%s1 + $0x350] sm:$0xff]
        %v403 = vld [vmem:[%s1 + $0x358] sm:$0xff]
        %v404 = vld [vmem:[%s1 + $0x360] sm:$0xff]
        %v405 = vld [vmem:[%s1 + $0x368] sm:$0xff]
        %v406 = vld [vmem:[%s1 + $0x370] sm:$0xff]
        %v407 = vld [vmem:[%s1 + $0x378] sm:$0xff]
        %v408 = vld [vmem:[%s1 + $0x380] sm:$0xff]
        %v409 = vld [vmem:[%s1 + $0x388] sm:$0xff]
        %v410 = vld [vmem:[%s1 + $0x390] sm:$0xff]
        %v411 = vld [vmem:[%s1 + $0x398] sm:$0xff]
        %v412 = vld [vmem:[%s1 + $0x3a0] sm:$0xff]
        %v413 = vld [vmem:[%s1 + $0x3a8] sm:$0xff]
        %v414 = vld [vmem:[%s1 + $0x3b0] sm:$0xff]
        %v415 = vld [vmem:[%s1 + $0x3b8] sm:$0xff]
        %v416 = vld [vmem:[%s1 + $0x3c0] sm:$0xff]
        %v417 = vld [vmem:[%s1 + $0x3c8] sm:$0xff]
        %v418 = vld [vmem:[%s1 + $0x3d0] sm:$0xff]
        %v419 = vld [vmem:[%s1 + $0x3d8] sm:$0xff]
        %v420 = vld [vmem:[%s1 + $0x3e0] sm:$0xff]
        %v421 = vld [vmem:[%s1 + $0x3e8] sm:$0xff]
        %v422 = vld [vmem:[%s1 + $0x3f0] sm:$0xff]
        %v423 = vld [vmem:[%s1 + $0x3f8] sm:$0xff]
        %v424 = vld [vmem:[%s1 + $0x400] sm:$0xff]
        %v425 = vld [vmem:[%s1 + $0x408] sm:$0xff]
        %v426 = vld [vmem:[%s1 + $0x410] sm:$0xff]
        %v427 = vld [vmem:[%s1 + $0x418] sm:$0xff]
        %v428 = vld [vmem:[%s1 + $0x420] sm:$0xff]
        %v429 = vld [vmem:[%s1 + $0x428] sm:$0xff]
        %v430 = vld [vmem:[%s1 + $0x430] sm:$0xff]
        %v431 = vld [vmem:[%s1 + $0x438] sm:$0xff]
        %v432 = vld [vmem:[%s1 + $0x440] sm:$0xff]
        %v433 = vld [vmem:[%s1 + $0x448] sm:$0xff]
        %v434 = vld [vmem:[%s1 + $0x450] sm:$0xff]
        %v435 = vld [vmem:[%s1 + $0x458] sm:$0xff]
        %v436 = vld [vmem:[%s1 + $0x460] sm:$0xff]
        %v437 = vld [vmem:[%s1 + $0x468] sm:$0xff]
        %v438 = vld [vmem:[%s1 + $0x470] sm:$0xff]
        %v439 = vld [vmem:[%s1 + $0x478] sm:$0xff]
        %v440 = vld [vmem:[%s1 + $0x480] sm:$0xff]
        %v441 = vld [vmem:[%s1 + $0x488] sm:$0xff]
        %v442 = vld [vmem:[%s1 + $0x490] sm:$0xff]
        %v443 = vld [vmem:[%s1 + $0x498] sm:$0xff]
        %v444 = vld [vmem:[%s1 + $0x4a0] sm:$0xff]
        %v445 = vld [vmem:[%s1 + $0x4a8] sm:$0xff]
        %v446 = vld [vmem:[%s1 + $0x4b0] sm:$0xff]
        %v447 = vld [vmem:[%s1 + $0x4b8] sm:$0xff]
        %v448 = vld [vmem:[%s1 + $0x4c0] sm:$0xff]
        %v449 = vld [vmem:[%s1 + $0x4c8] sm:$0xff]
        %v450 = vld [vmem:[%s1 + $0x4d0] sm:$0xff]
        %v451 = vld [vmem:[%s1 + $0x4d8] sm:$0xff]
        %v452 = vld [vmem:[%s1 + $0x4e0] sm:$0xff]
        %v453 = vld [vmem:[%s1 + $0x4e8] sm:$0xff]
        %v454 = vld [vmem:[%s1 + $0x4f0] sm:$0xff]
        %v455 = vld [vmem:[%s1 + $0x4f8] sm:$0xff]
        %v456 = vld [vmem:[%s2] sm:$0xf]
        %v457 = vld [vmem:[%s3] sm:$0xff]
        %v460 = vunpack.c.l.s4 1983009808
        %v461 = vunpack.c.0.s8 %v460
        %v462 = vlaneseq
        %v463 = vshrl.u32 %v462, 7
        %v464 = vsub.s32 %v461, %v463
        %v465 = vrot.slane %v295, %v464
        %v466 = vcombine.high %v465, %v465
        %v629 = vunpack.c.l.b16 %v296
        %v630 = vunpack.c.h.b16 %v296
        %v631 = vunpack.c.l.b16 %v297
        %v632 = vunpack.c.h.b16 %v297
        %v633 = vunpack.c.l.b16 %v298
        %v634 = vunpack.c.h.b16 %v298
        %v635 = vunpack.c.l.b16 %v299
        %v636 = vunpack.c.h.b16 %v299
        %v637 = vunpack.c.l.b16 %v300
        %v638 = vunpack.c.h.b16 %v300
        %v639 = vunpack.c.l.b16 %v301
        %v640 = vunpack.c.h.b16 %v301
        %v641 = vunpack.c.l.b16 %v302
        %v642 = vunpack.c.h.b16 %v302
        %v643 = vunpack.c.l.b16 %v303
        %v644 = vunpack.c.h.b16 %v303
        %v645 = vunpack.c.l.b16 %v304
        %v646 = vunpack.c.h.b16 %v304
        %v647 = vunpack.c.l.b16 %v305
        %v648 = vunpack.c.h.b16 %v305
        %v649 = vunpack.c.l.b16 %v306
        %v650 = vunpack.c.h.b16 %v306
        %v651 = vunpack.c.l.b16 %v307
        %v652 = vunpack.c.h.b16 %v307
        %v653 = vunpack.c.l.b16 %v308
        %v654 = vunpack.c.h.b16 %v308
        %v655 = vunpack.c.l.b16 %v309
        %v656 = vunpack.c.h.b16 %v309
        %v657 = vunpack.c.l.b16 %v310
        %v658 = vunpack.c.h.b16 %v310
        %v659 = vunpack.c.l.b16 %v311
        %v660 = vunpack.c.h.b16 %v311
        %v661 = vunpack.c.l.b16 %v312
        %v662 = vunpack.c.h.b16 %v312
        %v663 = vunpack.c.l.b16 %v313
        %v664 = vunpack.c.h.b16 %v313
        %v665 = vunpack.c.l.b16 %v314
        %v666 = vunpack.c.h.b16 %v314
        %v667 = vunpack.c.l.b16 %v315
        %v668 = vunpack.c.h.b16 %v315
        %v669 = vunpack.c.l.b16 %v316
        %v670 = vunpack.c.h.b16 %v316
        %v671 = vunpack.c.l.b16 %v317
        %v672 = vunpack.c.h.b16 %v317
        %v673 = vunpack.c.l.b16 %v318
        %v674 = vunpack.c.h.b16 %v318
        %v675 = vunpack.c.l.b16 %v319
        %v676 = vunpack.c.h.b16 %v319
        %v677 = vunpack.c.l.b16 %v320
        %v678 = vunpack.c.h.b16 %v320
        %v679 = vunpack.c.l.b16 %v321
        %v680 = vunpack.c.h.b16 %v321
        %v681 = vunpack.c.l.b16 %v322
        %v682 = vunpack.c.h.b16 %v322
        %v683 = vunpack.c.l.b16 %v323
        %v684 = vunpack.c.h.b16 %v323
        %v685 = vunpack.c.l.b16 %v324
        %v686 = vunpack.c.h.b16 %v324
        %v687 = vunpack.c.l.b16 %v325
        %v688 = vunpack.c.h.b16 %v325
        %v689 = vunpack.c.l.b16 %v326
        %v690 = vunpack.c.h.b16 %v326
        %v691 = vunpack.c.l.b16 %v327
        %v692 = vunpack.c.h.b16 %v327
        %v693 = vunpack.c.l.b16 %v328
        %v694 = vunpack.c.h.b16 %v328
        %v695 = vunpack.c.l.b16 %v329
        %v696 = vunpack.c.h.b16 %v329
        %v697 = vunpack.c.l.b16 %v330
        %v698 = vunpack.c.h.b16 %v330
        %v699 = vunpack.c.l.b16 %v331
        %v700 = vunpack.c.h.b16 %v331
        %v701 = vunpack.c.l.b16 %v332
        %v702 = vunpack.c.h.b16 %v332
        %v703 = vunpack.c.l.b16 %v333
        %v704 = vunpack.c.h.b16 %v333
        %v705 = vunpack.c.l.b16 %v334
        %v706 = vunpack.c.h.b16 %v334
        %v707 = vunpack.c.l.b16 %v335
        %v708 = vunpack.c.h.b16 %v335
        %v709 = vunpack.c.l.b16 %v336
        %v710 = vunpack.c.h.b16 %v336
        %v711 = vunpack.c.l.b16 %v337
        %v712 = vunpack.c.h.b16 %v337
        %v713 = vunpack.c.l.b16 %v338
        %v714 = vunpack.c.h.b16 %v338
        %v715 = vunpack.c.l.b16 %v339
        %v716 = vunpack.c.h.b16 %v339
        %v717 = vunpack.c.l.b16 %v340
        %v718 = vunpack.c.h.b16 %v340
        %v719 = vunpack.c.l.b16 %v341
        %v720 = vunpack.c.h.b16 %v341
        %v721 = vunpack.c.l.b16 %v342
        %v722 = vunpack.c.h.b16 %v342
        %v723 = vunpack.c.l.b16 %v343
        %v724 = vunpack.c.h.b16 %v343
        %v725 = vunpack.c.l.b16 %v344
        %v726 = vunpack.c.h.b16 %v344
        %v727 = vunpack.c.l.b16 %v345
        %v728 = vunpack.c.h.b16 %v345
        %v729 = vunpack.c.l.b16 %v346
        %v730 = vunpack.c.h.b16 %v346
        %v731 = vunpack.c.l.b16 %v347
        %v732 = vunpack.c.h.b16 %v347
        %v733 = vunpack.c.l.b16 %v348
        %v734 = vunpack.c.h.b16 %v348
        %v735 = vunpack.c.l.b16 %v349
        %v736 = vunpack.c.h.b16 %v349
        %v737 = vunpack.c.l.b16 %v350
        %v738 = vunpack.c.h.b16 %v350
        %v739 = vunpack.c.l.b16 %v351
        %v740 = vunpack.c.h.b16 %v351
        %v741 = vunpack.c.l.b16 %v352
        %v742 = vunpack.c.h.b16 %v352
        %v743 = vunpack.c.l.b16 %v353
        %v744 = vunpack.c.h.b16 %v353
        %v745 = vunpack.c.l.b16 %v354
        %v746 = vunpack.c.h.b16 %v354
        %v747 = vunpack.c.l.b16 %v355
        %v748 = vunpack.c.h.b16 %v355
        %v749 = vunpack.c.l.b16 %v356
        %v750 = vunpack.c.h.b16 %v356
        %v751 = vunpack.c.l.b16 %v357
        %v752 = vunpack.c.h.b16 %v357
        %v753 = vunpack.c.l.b16 %v358
        %v754 = vunpack.c.h.b16 %v358
        %v755 = vunpack.c.l.b16 %v359
        %v756 = vunpack.c.h.b16 %v359
        %v757 = vunpack.c.l.b16 %v360
        %v758 = vunpack.c.h.b16 %v360
        %v759 = vunpack.c.l.b16 %v361
        %v760 = vunpack.c.h.b16 %v361
        %v761 = vunpack.c.l.b16 %v362
        %v762 = vunpack.c.h.b16 %v362
        %v763 = vunpack.c.l.b16 %v363
        %v764 = vunpack.c.h.b16 %v363
        %v765 = vunpack.c.l.b16 %v364
        %v766 = vunpack.c.h.b16 %v364
        %v767 = vunpack.c.l.b16 %v365
        %v768 = vunpack.c.h.b16 %v365
        %v769 = vunpack.c.l.b16 %v366
        %v770 = vunpack.c.h.b16 %v366
        %v771 = vunpack.c.l.b16 %v367
        %v772 = vunpack.c.h.b16 %v367
        %v773 = vunpack.c.l.b16 %v368
        %v774 = vunpack.c.h.b16 %v368
        %v775 = vunpack.c.l.b16 %v369
        %v776 = vunpack.c.h.b16 %v369
        %v777 = vunpack.c.l.b16 %v370
        %v778 = vunpack.c.h.b16 %v370
        %v779 = vunpack.c.l.b16 %v371
        %v780 = vunpack.c.h.b16 %v371
        %v781 = vunpack.c.l.b16 %v372
        %v782 = vunpack.c.h.b16 %v372
        %v783 = vunpack.c.l.b16 %v373
        %v784 = vunpack.c.h.b16 %v373
        %v785 = vunpack.c.l.b16 %v374
        %v786 = vunpack.c.h.b16 %v374
        %v787 = vunpack.c.l.b16 %v375
        %v788 = vunpack.c.h.b16 %v375
        %v789 = vunpack.c.l.b16 %v376
        %v790 = vunpack.c.h.b16 %v376
        %v791 = vunpack.c.l.b16 %v377
        %v792 = vunpack.c.h.b16 %v377
        %v793 = vunpack.c.l.b16 %v378
        %v794 = vunpack.c.h.b16 %v378
        %v795 = vunpack.c.l.b16 %v379
        %v796 = vunpack.c.h.b16 %v379
        %v797 = vunpack.c.l.b16 %v380
        %v798 = vunpack.c.h.b16 %v380
        %v799 = vunpack.c.l.b16 %v381
        %v800 = vunpack.c.h.b16 %v381
        %v801 = vunpack.c.l.b16 %v382
        %v802 = vunpack.c.h.b16 %v382
        %v803 = vunpack.c.l.b16 %v383
        %v804 = vunpack.c.h.b16 %v383
        %v805 = vunpack.c.l.b16 %v384
        %v806 = vunpack.c.h.b16 %v384
        %v807 = vunpack.c.l.b16 %v385
        %v808 = vunpack.c.h.b16 %v385
        %v809 = vunpack.c.l.b16 %v386
        %v810 = vunpack.c.h.b16 %v386
        %v811 = vunpack.c.l.b16 %v387
        %v812 = vunpack.c.h.b16 %v387
        %v813 = vunpack.c.l.b16 %v388
        %v814 = vunpack.c.h.b16 %v388
        %v815 = vunpack.c.l.b16 %v389
        %v816 = vunpack.c.h.b16 %v389
        %v817 = vunpack.c.l.b16 %v390
        %v818 = vunpack.c.h.b16 %v390
        %v819 = vunpack.c.l.b16 %v391
        %v820 = vunpack.c.h.b16 %v391
        %v821 = vunpack.c.l.b16 %v392
        %v822 = vunpack.c.h.b16 %v392
        %v823 = vunpack.c.l.b16 %v393
        %v824 = vunpack.c.h.b16 %v393
        %v825 = vunpack.c.l.b16 %v394
        %v826 = vunpack.c.h.b16 %v394
        %v827 = vunpack.c.l.b16 %v395
        %v828 = vunpack.c.h.b16 %v395
        %v829 = vunpack.c.l.b16 %v396
        %v830 = vunpack.c.h.b16 %v396
        %v831 = vunpack.c.l.b16 %v397
        %v832 = vunpack.c.h.b16 %v397
        %v833 = vunpack.c.l.b16 %v398
        %v834 = vunpack.c.h.b16 %v398
        %v835 = vunpack.c.l.b16 %v399
        %v836 = vunpack.c.h.b16 %v399
        %v837 = vunpack.c.l.b16 %v400
        %v838 = vunpack.c.h.b16 %v400
        %v839 = vunpack.c.l.b16 %v401
        %v840 = vunpack.c.h.b16 %v401
        %v841 = vunpack.c.l.b16 %v402
        %v842 = vunpack.c.h.b16 %v402
        %v843 = vunpack.c.l.b16 %v403
        %v844 = vunpack.c.h.b16 %v403
        %v845 = vunpack.c.l.b16 %v404
        %v846 = vunpack.c.h.b16 %v404
        %v847 = vunpack.c.l.b16 %v405
        %v848 = vunpack.c.h.b16 %v405
        %v849 = vunpack.c.l.b16 %v406
        %v850 = vunpack.c.h.b16 %v406
        %v851 = vunpack.c.l.b16 %v407
        %v852 = vunpack.c.h.b16 %v407
        %v853 = vunpack.c.l.b16 %v408
        %v854 = vunpack.c.h.b16 %v408
        %v855 = vunpack.c.l.b16 %v409
        %v856 = vunpack.c.h.b16 %v409
        %v857 = vunpack.c.l.b16 %v410
        %v858 = vunpack.c.h.b16 %v410
        %v859 = vunpack.c.l.b16 %v411
        %v860 = vunpack.c.h.b16 %v411
        %v861 = vunpack.c.l.b16 %v412
        %v862 = vunpack.c.h.b16 %v412
        %v863 = vunpack.c.l.b16 %v413
        %v864 = vunpack.c.h.b16 %v413
        %v865 = vunpack.c.l.b16 %v414
        %v866 = vunpack.c.h.b16 %v414
        %v867 = vunpack.c.l.b16 %v415
        %v868 = vunpack.c.h.b16 %v415
        %v869 = vunpack.c.l.b16 %v416
        %v870 = vunpack.c.h.b16 %v416
        %v871 = vunpack.c.l.b16 %v417
        %v872 = vunpack.c.h.b16 %v417
        %v873 = vunpack.c.l.b16 %v418
        %v874 = vunpack.c.h.b16 %v418
        %v875 = vunpack.c.l.b16 %v419
        %v876 = vunpack.c.h.b16 %v419
        %v877 = vunpack.c.l.b16 %v420
        %v878 = vunpack.c.h.b16 %v420
        %v879 = vunpack.c.l.b16 %v421
        %v880 = vunpack.c.h.b16 %v421
        %v881 = vunpack.c.l.b16 %v422
        %v882 = vunpack.c.h.b16 %v422
        %v883 = vunpack.c.l.b16 %v423
        %v884 = vunpack.c.h.b16 %v423
        %v885 = vunpack.c.l.b16 %v424
        %v886 = vunpack.c.h.b16 %v424
        %v887 = vunpack.c.l.b16 %v425
        %v888 = vunpack.c.h.b16 %v425
        %v889 = vunpack.c.l.b16 %v426
        %v890 = vunpack.c.h.b16 %v426
        %v891 = vunpack.c.l.b16 %v427
        %v892 = vunpack.c.h.b16 %v427
        %v893 = vunpack.c.l.b16 %v428
        %v894 = vunpack.c.h.b16 %v428
        %v895 = vunpack.c.l.b16 %v429
        %v896 = vunpack.c.h.b16 %v429
        %v897 = vunpack.c.l.b16 %v430
        %v898 = vunpack.c.h.b16 %v430
        %v899 = vunpack.c.l.b16 %v431
        %v900 = vunpack.c.h.b16 %v431
        %v901 = vunpack.c.l.b16 %v432
        %v902 = vunpack.c.h.b16 %v432
        %v903 = vunpack.c.l.b16 %v433
        %v904 = vunpack.c.h.b16 %v433
        %v905 = vunpack.c.l.b16 %v434
        %v906 = vunpack.c.h.b16 %v434
        %v907 = vunpack.c.l.b16 %v435
        %v908 = vunpack.c.h.b16 %v435
        %v909 = vunpack.c.l.b16 %v436
        %v910 = vunpack.c.h.b16 %v436
        %v911 = vunpack.c.l.b16 %v437
        %v912 = vunpack.c.h.b16 %v437
        %v913 = vunpack.c.l.b16 %v438
        %v914 = vunpack.c.h.b16 %v438
        %v915 = vunpack.c.l.b16 %v439
        %v916 = vunpack.c.h.b16 %v439
        %v917 = vunpack.c.l.b16 %v440
        %v918 = vunpack.c.h.b16 %v440
        %v919 = vunpack.c.l.b16 %v441
        %v920 = vunpack.c.h.b16 %v441
        %v921 = vunpack.c.l.b16 %v442
        %v922 = vunpack.c.h.b16 %v442
        %v923 = vunpack.c.l.b16 %v443
        %v924 = vunpack.c.h.b16 %v443
        %v925 = vunpack.c.l.b16 %v444
        %v926 = vunpack.c.h.b16 %v444
        %v927 = vunpack.c.l.b16 %v445
        %v928 = vunpack.c.h.b16 %v445
        %v929 = vunpack.c.l.b16 %v446
        %v930 = vunpack.c.h.b16 %v446
        %v931 = vunpack.c.l.b16 %v447
        %v932 = vunpack.c.h.b16 %v447
        %v933 = vunpack.c.l.b16 %v448
        %v934 = vunpack.c.h.b16 %v448
        %v935 = vunpack.c.l.b16 %v449
        %v936 = vunpack.c.h.b16 %v449
        %v937 = vunpack.c.l.b16 %v450
        %v938 = vunpack.c.h.b16 %v450
        %v939 = vunpack.c.l.b16 %v451
        %v940 = vunpack.c.h.b16 %v451
        %v941 = vunpack.c.l.b16 %v452
        %v942 = vunpack.c.h.b16 %v452
        %v943 = vunpack.c.l.b16 %v453
        %v944 = vunpack.c.h.b16 %v453
        %v945 = vunpack.c.l.b16 %v454
        %v946 = vunpack.c.h.b16 %v454
        %v947 = vunpack.c.l.b16 %v455
        %v948 = vunpack.c.h.b16 %v455
        %v949 = vpack.c.b16 %v639, %v629
        %v950 = vpack.c.b16 %v640, %v630
        %v951 = vpack.c.b16 %v641, %v631
        %v952 = vpack.c.b16 %v642, %v632
        %v953 = vpack.c.b16 %v643, %v633
        %v954 = vpack.c.b16 %v644, %v634
        %v955 = vpack.c.b16 %v645, %v635
        %v956 = vpack.c.b16 %v646, %v636
        %v957 = vpack.c.b16 %v647, %v637
        %v958 = vpack.c.b16 %v648, %v638
        %v959 = vpack.c.b16 %v659, %v649
        %v960 = vpack.c.b16 %v660, %v650
        %v961 = vpack.c.b16 %v661, %v651
        %v962 = vpack.c.b16 %v662, %v652
        %v963 = vpack.c.b16 %v663, %v653
        %v964 = vpack.c.b16 %v664, %v654
        %v965 = vpack.c.b16 %v665, %v655
        %v966 = vpack.c.b16 %v666, %v656
        %v967 = vpack.c.b16 %v667, %v657
        %v968 = vpack.c.b16 %v668, %v658
        %v969 = vpack.c.b16 %v679, %v669
        %v970 = vpack.c.b16 %v680, %v670
        %v971 = vpack.c.b16 %v681, %v671
        %v972 = vpack.c.b16 %v682, %v672
        %v973 = vpack.c.b16 %v683, %v673
        %v974 = vpack.c.b16 %v684, %v674
        %v975 = vpack.c.b16 %v685, %v675
        %v976 = vpack.c.b16 %v686, %v676
        %v977 = vpack.c.b16 %v687, %v677
        %v978 = vpack.c.b16 %v688, %v678
        %v979 = vpack.c.b16 %v699, %v689
        %v980 = vpack.c.b16 %v700, %v690
        %v981 = vpack.c.b16 %v701, %v691
        %v982 = vpack.c.b16 %v702, %v692
        %v983 = vpack.c.b16 %v703, %v693
        %v984 = vpack.c.b16 %v704, %v694
        %v985 = vpack.c.b16 %v705, %v695
        %v986 = vpack.c.b16 %v706, %v696
        %v987 = vpack.c.b16 %v707, %v697
        %v988 = vpack.c.b16 %v708, %v698
        %v989 = vpack.c.b16 %v719, %v709
        %v990 = vpack.c.b16 %v720, %v710
        %v991 = vpack.c.b16 %v721, %v711
        %v992 = vpack.c.b16 %v722, %v712
        %v993 = vpack.c.b16 %v723, %v713
        %v994 = vpack.c.b16 %v724, %v714
        %v995 = vpack.c.b16 %v725, %v715
        %v996 = vpack.c.b16 %v726, %v716
        %v997 = vpack.c.b16 %v727, %v717
        %v998 = vpack.c.b16 %v728, %v718
        %v999 = vpack.c.b16 %v739, %v729
        %v1000 = vpack.c.b16 %v740, %v730
        %v1001 = vpack.c.b16 %v741, %v731
        %v1002 = vpack.c.b16 %v742, %v732
        %v1003 = vpack.c.b16 %v743, %v733
        %v1004 = vpack.c.b16 %v744, %v734
        %v1005 = vpack.c.b16 %v745, %v735
        %v1006 = vpack.c.b16 %v746, %v736
        %v1007 = vpack.c.b16 %v747, %v737
        %v1008 = vpack.c.b16 %v748, %v738
        %v1009 = vpack.c.b16 %v759, %v749
        %v1010 = vpack.c.b16 %v760, %v750
        %v1011 = vpack.c.b16 %v761, %v751
        %v1012 = vpack.c.b16 %v762, %v752
        %v1013 = vpack.c.b16 %v763, %v753
        %v1014 = vpack.c.b16 %v764, %v754
        %v1015 = vpack.c.b16 %v765, %v755
        %v1016 = vpack.c.b16 %v766, %v756
        %v1017 = vpack.c.b16 %v767, %v757
        %v1018 = vpack.c.b16 %v768, %v758
        %v1019 = vpack.c.b16 %v779, %v769
        %v1020 = vpack.c.b16 %v780, %v770
        %v1021 = vpack.c.b16 %v781, %v771
        %v1022 = vpack.c.b16 %v782, %v772
        %v1023 = vpack.c.b16 %v783, %v773
        %v1024 = vpack.c.b16 %v784, %v774
        %v1025 = vpack.c.b16 %v785, %v775
        %v1026 = vpack.c.b16 %v786, %v776
        %v1027 = vpack.c.b16 %v787, %v777
        %v1028 = vpack.c.b16 %v788, %v778
        %v1029 = vpack.c.b16 %v799, %v789
        %v1030 = vpack.c.b16 %v800, %v790
        %v1031 = vpack.c.b16 %v801, %v791
        %v1032 = vpack.c.b16 %v802, %v792
        %v1033 = vpack.c.b16 %v803, %v793
        %v1034 = vpack.c.b16 %v804, %v794
        %v1035 = vpack.c.b16 %v805, %v795
        %v1036 = vpack.c.b16 %v806, %v796
        %v1037 = vpack.c.b16 %v807, %v797
        %v1038 = vpack.c.b16 %v808, %v798
        %v1039 = vpack.c.b16 %v819, %v809
        %v1040 = vpack.c.b16 %v820, %v810
        %v1041 = vpack.c.b16 %v821, %v811
        %v1042 = vpack.c.b16 %v822, %v812
        %v1043 = vpack.c.b16 %v823, %v813
        %v1044 = vpack.c.b16 %v824, %v814
        %v1045 = vpack.c.b16 %v825, %v815
        %v1046 = vpack.c.b16 %v826, %v816
        %v1047 = vpack.c.b16 %v827, %v817
        %v1048 = vpack.c.b16 %v828, %v818
        %v1049 = vpack.c.b16 %v839, %v829
        %v1050 = vpack.c.b16 %v840, %v830
        %v1051 = vpack.c.b16 %v841, %v831
        %v1052 = vpack.c.b16 %v842, %v832
        %v1053 = vpack.c.b16 %v843, %v833
        %v1054 = vpack.c.b16 %v844, %v834
        %v1055 = vpack.c.b16 %v845, %v835
        %v1056 = vpack.c.b16 %v846, %v836
        %v1057 = vpack.c.b16 %v847, %v837
        %v1058 = vpack.c.b16 %v848, %v838
        %v1059 = vpack.c.b16 %v859, %v849
        %v1060 = vpack.c.b16 %v860, %v850
        %v1061 = vpack.c.b16 %v861, %v851
        %v1062 = vpack.c.b16 %v862, %v852
        %v1063 = vpack.c.b16 %v863, %v853
        %v1064 = vpack.c.b16 %v864, %v854
        %v1065 = vpack.c.b16 %v865, %v855
        %v1066 = vpack.c.b16 %v866, %v856
        %v1067 = vpack.c.b16 %v867, %v857
        %v1068 = vpack.c.b16 %v868, %v858
        %v1069 = vpack.c.b16 %v879, %v869
        %v1070 = vpack.c.b16 %v880, %v870
        %v1071 = vpack.c.b16 %v881, %v871
        %v1072 = vpack.c.b16 %v882, %v872
        %v1073 = vpack.c.b16 %v883, %v873
        %v1074 = vpack.c.b16 %v884, %v874
        %v1075 = vpack.c.b16 %v885, %v875
        %v1076 = vpack.c.b16 %v886, %v876
        %v1077 = vpack.c.b16 %v887, %v877
        %v1078 = vpack.c.b16 %v888, %v878
        %v1079 = vpack.c.b16 %v899, %v889
        %v1080 = vpack.c.b16 %v900, %v890
        %v1081 = vpack.c.b16 %v901, %v891
        %v1082 = vpack.c.b16 %v902, %v892
        %v1083 = vpack.c.b16 %v903, %v893
        %v1084 = vpack.c.b16 %v904, %v894
        %v1085 = vpack.c.b16 %v905, %v895
        %v1086 = vpack.c.b16 %v906, %v896
        %v1087 = vpack.c.b16 %v907, %v897
        %v1088 = vpack.c.b16 %v908, %v898
        %v1089 = vpack.c.b16 %v919, %v909
        %v1090 = vpack.c.b16 %v920, %v910
        %v1091 = vpack.c.b16 %v921, %v911
        %v1092 = vpack.c.b16 %v922, %v912
        %v1093 = vpack.c.b16 %v923, %v913
        %v1094 = vpack.c.b16 %v924, %v914
        %v1095 = vpack.c.b16 %v925, %v915
        %v1096 = vpack.c.b16 %v926, %v916
        %v1097 = vpack.c.b16 %v927, %v917
        %v1098 = vpack.c.b16 %v928, %v918
        %v1099 = vpack.c.b16 %v939, %v929
        %v1100 = vpack.c.b16 %v940, %v930
        %v1101 = vpack.c.b16 %v941, %v931
        %v1102 = vpack.c.b16 %v942, %v932
        %v1103 = vpack.c.b16 %v943, %v933
        %v1104 = vpack.c.b16 %v944, %v934
        %v1105 = vpack.c.b16 %v945, %v935
        %v1106 = vpack.c.b16 %v946, %v936
        %v1107 = vpack.c.b16 %v947, %v937
        %v1108 = vpack.c.b16 %v948, %v938
        %1269 = vmatprep.subr.bf16.mxu0 %v950
        %1270 = vmatpush1.bf16.msra.mxu0 %v949
        %1271 = vmatprep.subr.bf16.mxu0 %v960
        %1272 = vmatpush1.bf16.msra.mxu0 %v959
        %1273 = vmatprep.subr.bf16.mxu0 %v970
        %1274 = vmatpush1.bf16.msra.mxu0 %v969
        %1275 = vmatprep.subr.bf16.mxu0 %v980
        %1276 = vmatpush1.bf16.msra.mxu0 %v979
        %1277 = vmatprep.subr.bf16.mxu0 %v990
        %1278 = vmatpush1.bf16.msra.mxu0 %v989
        %1279 = vmatprep.subr.bf16.mxu0 %v1000
        %1280 = vmatpush1.bf16.msra.mxu0 %v999
        %1281 = vmatprep.subr.bf16.mxu0 %v1010
        %1282 = vmatpush1.bf16.msra.mxu0 %v1009
        %1283 = vmatprep.subr.bf16.mxu0 %v1020
        %1284 = vmatpush1.bf16.msra.mxu0 %v1019
        %1285 = vmatprep.subr.bf16.mxu0 %v1030
        %1286 = vmatpush1.bf16.msra.mxu0 %v1029
        %1287 = vmatprep.subr.bf16.mxu0 %v1040
        %1288 = vmatpush1.bf16.msra.mxu0 %v1039
        %1289 = vmatprep.subr.bf16.mxu0 %v1050
        %1290 = vmatpush1.bf16.msra.mxu0 %v1049
        %1291 = vmatprep.subr.bf16.mxu0 %v1060
        %1292 = vmatpush1.bf16.msra.mxu0 %v1059
        %1293 = vmatprep.subr.bf16.mxu0 %v1070
        %1294 = vmatpush1.bf16.msra.mxu0 %v1069
        %1295 = vmatprep.subr.bf16.mxu0 %v1080
        %1296 = vmatpush1.bf16.msra.mxu0 %v1079
        %1297 = vmatprep.subr.bf16.mxu0 %v1090
        %1298 = vmatpush1.bf16.msra.mxu0 %v1089
        %1299 = vmatprep.subr.bf16.mxu0 %v1100
        %1300 = vmatpush1.bf16.msra.mxu0 %v1099
        %1301 = vmatprep.mubr.bf16.mxu0 %v466
        %1302 = vmatmul.mubr.bf16.gmra.mrb[0].mxu0 %v465
        %v1303 = vpop.f32.mrb[0].mxu0
        %v1304 = vadd.f32 0.0, %v1303
        %v1305 = vpop.f32.mrb[0].mxu0
        %v1306 = vadd.f32 0.0, %v1305
        %v1307 = vpop.f32.mrb[0].mxu0
        %v1308 = vpop.f32.mrb[0].mxu0
        %1309 = vdwg.mxu0
        %1310 = vmatprep.subr.bf16.mxu0 %v952
        %1311 = vmatpush1.bf16.msra.mxu0 %v951
        %1312 = vmatprep.subr.bf16.mxu0 %v962
        %1313 = vmatpush1.bf16.msra.mxu0 %v961
        %1314 = vmatprep.subr.bf16.mxu0 %v972
        %1315 = vmatpush1.bf16.msra.mxu0 %v971
        %1316 = vmatprep.subr.bf16.mxu0 %v982
        %1317 = vmatpush1.bf16.msra.mxu0 %v981
        %1318 = vmatprep.subr.bf16.mxu0 %v992
        %1319 = vmatpush1.bf16.msra.mxu0 %v991
        %1320 = vmatprep.subr.bf16.mxu0 %v1002
        %1321 = vmatpush1.bf16.msra.mxu0 %v1001
        %1322 = vmatprep.subr.bf16.mxu0 %v1012
        %1323 = vmatpush1.bf16.msra.mxu0 %v1011
        %1324 = vmatprep.subr.bf16.mxu0 %v1022
        %1325 = vmatpush1.bf16.msra.mxu0 %v1021
        %1326 = vmatprep.subr.bf16.mxu0 %v1032
        %1327 = vmatpush1.bf16.msra.mxu0 %v1031
        %1328 = vmatprep.subr.bf16.mxu0 %v1042
        %1329 = vmatpush1.bf16.msra.mxu0 %v1041
        %1330 = vmatprep.subr.bf16.mxu0 %v1052
        %1331 = vmatpush1.bf16.msra.mxu0 %v1051
        %1332 = vmatprep.subr.bf16.mxu0 %v1062
        %1333 = vmatpush1.bf16.msra.mxu0 %v1061
        %1334 = vmatprep.subr.bf16.mxu0 %v1072
        %1335 = vmatpush1.bf16.msra.mxu0 %v1071
        %1336 = vmatprep.subr.bf16.mxu0 %v1082
        %1337 = vmatpush1.bf16.msra.mxu0 %v1081
        %1338 = vmatprep.subr.bf16.mxu0 %v1092
        %1339 = vmatpush1.bf16.msra.mxu0 %v1091
        %1340 = vmatprep.subr.bf16.mxu0 %v1102
        %1341 = vmatpush1.bf16.msra.mxu0 %v1101
        %1342 = vmatprep.mubr.bf16.mxu0 %v466
        %1343 = vmatmul.mubr.bf16.gmra.mrb[0].mxu0 %v465
        %v1344 = vpop.f32.mrb[0].mxu0
        %v1345 = vadd.f32 0.0, %v1344
        %v1346 = vpop.f32.mrb[0].mxu0
        %v1347 = vadd.f32 0.0, %v1346
        %v1348 = vpop.f32.mrb[0].mxu0
        %v1349 = vpop.f32.mrb[0].mxu0
        %1350 = vdwg.mxu0
        %1351 = vmatprep.subr.bf16.mxu0 %v954
        %1352 = vmatpush1.bf16.msra.mxu0 %v953
        %1353 = vmatprep.subr.bf16.mxu0 %v964
        %1354 = vmatpush1.bf16.msra.mxu0 %v963
        %1355 = vmatprep.subr.bf16.mxu0 %v974
        %1356 = vmatpush1.bf16.msra.mxu0 %v973
        %1357 = vmatprep.subr.bf16.mxu0 %v984
        %1358 = vmatpush1.bf16.msra.mxu0 %v983
        %1359 = vmatprep.subr.bf16.mxu0 %v994
        %1360 = vmatpush1.bf16.msra.mxu0 %v993
        %1361 = vmatprep.subr.bf16.mxu0 %v1004
        %1362 = vmatpush1.bf16.msra.mxu0 %v1003
        %1363 = vmatprep.subr.bf16.mxu0 %v1014
        %1364 = vmatpush1.bf16.msra.mxu0 %v1013
        %1365 = vmatprep.subr.bf16.mxu0 %v1024
        %1366 = vmatpush1.bf16.msra.mxu0 %v1023
        %1367 = vmatprep.subr.bf16.mxu0 %v1034
        %1368 = vmatpush1.bf16.msra.mxu0 %v1033
        %1369 = vmatprep.subr.bf16.mxu0 %v1044
        %1370 = vmatpush1.bf16.msra.mxu0 %v1043
        %1371 = vmatprep.subr.bf16.mxu0 %v1054
        %1372 = vmatpush1.bf16.msra.mxu0 %v1053
        %1373 = vmatprep.subr.bf16.mxu0 %v1064
        %1374 = vmatpush1.bf16.msra.mxu0 %v1063
        %1375 = vmatprep.subr.bf16.mxu0 %v1074
        %1376 = vmatpush1.bf16.msra.mxu0 %v1073
        %1377 = vmatprep.subr.bf16.mxu0 %v1084
        %1378 = vmatpush1.bf16.msra.mxu0 %v1083
        %1379 = vmatprep.subr.bf16.mxu0 %v1094
        %1380 = vmatpush1.bf16.msra.mxu0 %v1093
        %1381 = vmatprep.subr.bf16.mxu0 %v1104
        %1382 = vmatpush1.bf16.msra.mxu0 %v1103
        %1383 = vmatprep.mubr.bf16.mxu0 %v466
        %1384 = vmatmul.mubr.bf16.gmra.mrb[0].mxu0 %v465
        %v1385 = vpop.f32.mrb[0].mxu0
        %v1386 = vadd.f32 0.0, %v1385
        %v1387 = vpop.f32.mrb[0].mxu0
        %v1388 = vadd.f32 0.0, %v1387
        %v1389 = vpop.f32.mrb[0].mxu0
        %v1390 = vpop.f32.mrb[0].mxu0
        %1391 = vdwg.mxu0
        %1392 = vmatprep.subr.bf16.mxu0 %v956
        %1393 = vmatpush1.bf16.msra.mxu0 %v955
        %1394 = vmatprep.subr.bf16.mxu0 %v966
        %1395 = vmatpush1.bf16.msra.mxu0 %v965
        %1396 = vmatprep.subr.bf16.mxu0 %v976
        %1397 = vmatpush1.bf16.msra.mxu0 %v975
        %1398 = vmatprep.subr.bf16.mxu0 %v986
        %1399 = vmatpush1.bf16.msra.mxu0 %v985
        %1400 = vmatprep.subr.bf16.mxu0 %v996
        %1401 = vmatpush1.bf16.msra.mxu0 %v995
        %1402 = vmatprep.subr.bf16.mxu0 %v1006
        %1403 = vmatpush1.bf16.msra.mxu0 %v1005
        %1404 = vmatprep.subr.bf16.mxu0 %v1016
        %1405 = vmatpush1.bf16.msra.mxu0 %v1015
        %1406 = vmatprep.subr.bf16.mxu0 %v1026
        %1407 = vmatpush1.bf16.msra.mxu0 %v1025
        %1408 = vmatprep.subr.bf16.mxu0 %v1036
        %1409 = vmatpush1.bf16.msra.mxu0 %v1035
        %1410 = vmatprep.subr.bf16.mxu0 %v1046
        %1411 = vmatpush1.bf16.msra.mxu0 %v1045
        %1412 = vmatprep.subr.bf16.mxu0 %v1056
        %1413 = vmatpush1.bf16.msra.mxu0 %v1055
        %1414 = vmatprep.subr.bf16.mxu0 %v1066
        %1415 = vmatpush1.bf16.msra.mxu0 %v1065
        %1416 = vmatprep.subr.bf16.mxu0 %v1076
        %1417 = vmatpush1.bf16.msra.mxu0 %v1075
        %1418 = vmatprep.subr.bf16.mxu0 %v1086
        %1419 = vmatpush1.bf16.msra.mxu0 %v1085
        %1420 = vmatprep.subr.bf16.mxu0 %v1096
        %1421 = vmatpush1.bf16.msra.mxu0 %v1095
        %1422 = vmatprep.subr.bf16.mxu0 %v1106
        %1423 = vmatpush1.bf16.msra.mxu0 %v1105
        %1424 = vmatprep.mubr.bf16.mxu0 %v466
        %1425 = vmatmul.mubr.bf16.gmra.mrb[0].mxu0 %v465
        %v1426 = vpop.f32.mrb[0].mxu0
        %v1427 = vadd.f32 0.0, %v1426
        %v1428 = vpop.f32.mrb[0].mxu0
        %v1429 = vadd.f32 0.0, %v1428
        %v1430 = vpop.f32.mrb[0].mxu0
        %v1431 = vpop.f32.mrb[0].mxu0
        %1432 = vdwg.mxu0
        %1433 = vmatprep.subr.bf16.mxu0 %v958
        %1434 = vmatpush1.bf16.msra.mxu0 %v957
        %1435 = vmatprep.subr.bf16.mxu0 %v968
        %1436 = vmatpush1.bf16.msra.mxu0 %v967
        %1437 = vmatprep.subr.bf16.mxu0 %v978
        %1438 = vmatpush1.bf16.msra.mxu0 %v977
        %1439 = vmatprep.subr.bf16.mxu0 %v988
        %1440 = vmatpush1.bf16.msra.mxu0 %v987
        %1441 = vmatprep.subr.bf16.mxu0 %v998
        %1442 = vmatpush1.bf16.msra.mxu0 %v997
        %1443 = vmatprep.subr.bf16.mxu0 %v1008
        %1444 = vmatpush1.bf16.msra.mxu0 %v1007
        %1445 = vmatprep.subr.bf16.mxu0 %v1018
        %1446 = vmatpush1.bf16.msra.mxu0 %v1017
        %1447 = vmatprep.subr.bf16.mxu0 %v1028
        %1448 = vmatpush1.bf16.msra.mxu0 %v1027
        %1449 = vmatprep.subr.bf16.mxu0 %v1038
        %1450 = vmatpush1.bf16.msra.mxu0 %v1037
        %1451 = vmatprep.subr.bf16.mxu0 %v1048
        %1452 = vmatpush1.bf16.msra.mxu0 %v1047
        %1453 = vmatprep.subr.bf16.mxu0 %v1058
        %1454 = vmatpush1.bf16.msra.mxu0 %v1057
        %1455 = vmatprep.subr.bf16.mxu0 %v1068
        %1456 = vmatpush1.bf16.msra.mxu0 %v1067
        %1457 = vmatprep.subr.bf16.mxu0 %v1078
        %1458 = vmatpush1.bf16.msra.mxu0 %v1077
        %1459 = vmatprep.subr.bf16.mxu0 %v1088
        %1460 = vmatpush1.bf16.msra.mxu0 %v1087
        %1461 = vmatprep.subr.bf16.mxu0 %v1098
        %1462 = vmatpush1.bf16.msra.mxu0 %v1097
        %1463 = vmatprep.subr.bf16.mxu0 %v1108
        %1464 = vmatpush1.bf16.msra.mxu0 %v1107
        %1465 = vmatprep.mubr.bf16.mxu0 %v466
        %1466 = vmatmul.mubr.bf16.gmra.mrb[0].mxu0 %v465
        %v1467 = vpop.f32.mrb[0].mxu0
        %v1468 = vadd.f32 0.0, %v1467
        %v1469 = vpop.f32.mrb[0].mxu0
        %v1470 = vadd.f32 0.0, %v1469
        %v1471 = vpop.f32.mrb[0].mxu0
        %v1472 = vpop.f32.mrb[0].mxu0
        %1473 = vdwg.mxu0
        %v1474 = vpack.c.bf16 %v1304, %v1304
        %v1475 = vpack.c.bf16 %v1306, %v1306
        %v1476 = vpack.c.bf16 %v1345, %v1345
        %v1477 = vpack.c.bf16 %v1347, %v1347
        %v1478 = vpack.c.bf16 %v1386, %v1386
        %v1479 = vpack.c.bf16 %v1388, %v1388
        %v1480 = vpack.c.bf16 %v1427, %v1427
        %v1481 = vpack.c.bf16 %v1429, %v1429
        %v1482 = vpack.c.bf16 %v1468, %v1468
        %v1483 = vpack.c.bf16 %v1470, %v1470
        %v1493 = vrot.slane %v1474, 6
        %v1494 = vrot.slane %v1475, 6
        %v1495 = vrot.slane %v1476, 6
        %v1496 = vrot.slane %v1477, 6
        %v1497 = vrot.slane %v1478, 6
        %v1498 = vrot.slane %v1479, 6
        %v1499 = vrot.slane %v1480, 6
        %v1500 = vrot.slane %v1481, 6
        %v1501 = vrot.slane %v1482, 6
        %1502 = vrot.lane.b32.xlu0 %v1493, 127
        %v1503 = vpop.permute.xlu0 %1502
        %1504 = vrot.lane.b32.xlu0 %v1494, 127
        %v1505 = vpop.permute.xlu0 %1504
        %1506 = vrot.lane.b32.xlu0 %v1495, 127
        %v1507 = vpop.permute.xlu0 %1506
        %1508 = vrot.lane.b32.xlu0 %v1496, 127
        %v1509 = vpop.permute.xlu0 %1508
        %1510 = vrot.lane.b32.xlu0 %v1497, 127
        %v1511 = vpop.permute.xlu0 %1510
        %1512 = vrot.lane.b32.xlu0 %v1498, 127
        %v1513 = vpop.permute.xlu0 %1512
        %1514 = vrot.lane.b32.xlu0 %v1499, 127
        %v1515 = vpop.permute.xlu0 %1514
        %1516 = vrot.lane.b32.xlu0 %v1500, 127
        %v1517 = vpop.permute.xlu0 %1516
        %1518 = vrot.lane.b32.xlu0 %v1501, 127
        %v1519 = vpop.permute.xlu0 %1518
        %vm1520 = vcmask 1039360
        %v1521 = vsel %vm1520, %v1503, %v1505
        %v1522 = vsel %vm1520, %v1505, %v1507
        %v1523 = vsel %vm1520, %v1507, %v1509
        %v1524 = vsel %vm1520, %v1509, %v1511
        %v1525 = vsel %vm1520, %v1511, %v1513
        %v1526 = vsel %vm1520, %v1513, %v1515
        %v1527 = vsel %vm1520, %v1515, %v1517
        %v1528 = vsel %vm1520, %v1517, %v1519
        %v1529 = vrot.slane %v1474, 4
        %v1530 = vrot.slane %v1475, 4
        %v1531 = vrot.slane %v1476, 4
        %v1532 = vrot.slane %v1477, 4
        %v1533 = vrot.slane %v1478, 4
        %v1534 = vrot.slane %v1479, 4
        %v1535 = vrot.slane %v1480, 4
        %v1536 = vrot.slane %v1481, 4
        %v1537 = vrot.slane %v1482, 4
        %1538 = vrot.lane.b32.xlu0 %v1529, 126
        %v1539 = vpop.permute.xlu0 %1538
        %1540 = vrot.lane.b32.xlu0 %v1530, 126
        %v1541 = vpop.permute.xlu0 %1540
        %1542 = vrot.lane.b32.xlu0 %v1531, 126
        %v1543 = vpop.permute.xlu0 %1542
        %1544 = vrot.lane.b32.xlu0 %v1532, 126
        %v1545 = vpop.permute.xlu0 %1544
        %1546 = vrot.lane.b32.xlu0 %v1533, 126
        %v1547 = vpop.permute.xlu0 %1546
        %1548 = vrot.lane.b32.xlu0 %v1534, 126
        %v1549 = vpop.permute.xlu0 %1548
        %1550 = vrot.lane.b32.xlu0 %v1535, 126
        %v1551 = vpop.permute.xlu0 %1550
        %1552 = vrot.lane.b32.xlu0 %v1536, 126
        %v1553 = vpop.permute.xlu0 %1552
        %1554 = vrot.lane.b32.xlu0 %v1537, 126
        %v1555 = vpop.permute.xlu0 %1554
        %vm1556 = vcmask 1031168
        %v1557 = vsel %vm1556, %v1539, %v1541
        %v1558 = vsel %vm1556, %v1541, %v1543
        %v1559 = vsel %vm1556, %v1543, %v1545
        %v1560 = vsel %vm1556, %v1545, %v1547
        %v1561 = vsel %vm1556, %v1547, %v1549
        %v1562 = vsel %vm1556, %v1549, %v1551
        %v1563 = vsel %vm1556, %v1551, %v1553
        %v1564 = vsel %vm1556, %v1553, %v1555
        %v1565 = vrot.slane %v1474, 2
        %v1566 = vrot.slane %v1475, 2
        %v1567 = vrot.slane %v1476, 2
        %v1568 = vrot.slane %v1477, 2
        %v1569 = vrot.slane %v1478, 2
        %v1570 = vrot.slane %v1479, 2
        %v1571 = vrot.slane %v1480, 2
        %v1572 = vrot.slane %v1481, 2
        %v1573 = vrot.slane %v1482, 2
        %1574 = vrot.lane.b32.xlu0 %v1565, 94
        %v1575 = vpop.permute.xlu0 %1574
        %1576 = vrot.lane.b32.xlu0 %v1566, 94
        %v1577 = vpop.permute.xlu0 %1576
        %1578 = vrot.lane.b32.xlu0 %v1567, 94
        %v1579 = vpop.permute.xlu0 %1578
        %1580 = vrot.lane.b32.xlu0 %v1568, 94
        %v1581 = vpop.permute.xlu0 %1580
        %1582 = vrot.lane.b32.xlu0 %v1569, 94
        %v1583 = vpop.permute.xlu0 %1582
        %1584 = vrot.lane.b32.xlu0 %v1570, 94
        %v1585 = vpop.permute.xlu0 %1584
        %1586 = vrot.lane.b32.xlu0 %v1571, 94
        %v1587 = vpop.permute.xlu0 %1586
        %1588 = vrot.lane.b32.xlu0 %v1572, 94
        %v1589 = vpop.permute.xlu0 %1588
        %1590 = vrot.lane.b32.xlu0 %v1573, 94
        %v1591 = vpop.permute.xlu0 %1590
        %vm1592 = vcmask 769024
        %v1593 = vsel %vm1592, %v1575, %v1577
        %v1594 = vsel %vm1592, %v1577, %v1579
        %v1595 = vsel %vm1592, %v1579, %v1581
        %v1596 = vsel %vm1592, %v1581, %v1583
        %v1597 = vsel %vm1592, %v1583, %v1585
        %v1598 = vsel %vm1592, %v1585, %v1587
        %v1599 = vsel %vm1592, %v1587, %v1589
        %v1600 = vsel %vm1592, %v1589, %v1591
        %1601 = vrot.lane.b32.xlu0 %v1474, 93
        %v1602 = vpop.permute.xlu0 %1601
        %1603 = vrot.lane.b32.xlu0 %v1475, 93
        %v1604 = vpop.permute.xlu0 %1603
        %1605 = vrot.lane.b32.xlu0 %v1476, 93
        %v1606 = vpop.permute.xlu0 %1605
        %1607 = vrot.lane.b32.xlu0 %v1477, 93
        %v1608 = vpop.permute.xlu0 %1607
        %1609 = vrot.lane.b32.xlu0 %v1478, 93
        %v1610 = vpop.permute.xlu0 %1609
        %1611 = vrot.lane.b32.xlu0 %v1479, 93
        %v1612 = vpop.permute.xlu0 %1611
        %1613 = vrot.lane.b32.xlu0 %v1480, 93
        %v1614 = vpop.permute.xlu0 %1613
        %1615 = vrot.lane.b32.xlu0 %v1481, 93
        %v1616 = vpop.permute.xlu0 %1615
        %1617 = vrot.lane.b32.xlu0 %v1482, 93
        %v1618 = vpop.permute.xlu0 %1617
        %vm1619 = vcmask 760832
        %v1620 = vsel %vm1619, %v1602, %v1604
        %v1621 = vsel %vm1619, %v1604, %v1606
        %v1622 = vsel %vm1619, %v1606, %v1608
        %v1623 = vsel %vm1619, %v1608, %v1610
        %v1624 = vsel %vm1619, %v1610, %v1612
        %v1625 = vsel %vm1619, %v1612, %v1614
        %v1626 = vsel %vm1619, %v1614, %v1616
        %v1627 = vsel %vm1619, %v1616, %v1618
        %1628 = vrot.lane.b32.xlu0 %v1493, 92
        %v1629 = vpop.permute.xlu0 %1628
        %1630 = vrot.lane.b32.xlu0 %v1494, 92
        %v1631 = vpop.permute.xlu0 %1630
        %1632 = vrot.lane.b32.xlu0 %v1495, 92
        %v1633 = vpop.permute.xlu0 %1632
        %1634 = vrot.lane.b32.xlu0 %v1496, 92
        %v1635 = vpop.permute.xlu0 %1634
        %1636 = vrot.lane.b32.xlu0 %v1497, 92
        %v1637 = vpop.permute.xlu0 %1636
        %1638 = vrot.lane.b32.xlu0 %v1498, 92
        %v1639 = vpop.permute.xlu0 %1638
        %1640 = vrot.lane.b32.xlu0 %v1499, 92
        %v1641 = vpop.permute.xlu0 %1640
        %1642 = vrot.lane.b32.xlu0 %v1500, 92
        %v1643 = vpop.permute.xlu0 %1642
        %1644 = vrot.lane.b32.xlu0 %v1501, 92
        %v1645 = vpop.permute.xlu0 %1644
        %vm1646 = vcmask 752640
        %v1647 = vsel %vm1646, %v1629, %v1631
        %v1648 = vsel %vm1646, %v1631, %v1633
        %v1649 = vsel %vm1646, %v1633, %v1635
        %v1650 = vsel %vm1646, %v1635, %v1637
        %v1651 = vsel %vm1646, %v1637, %v1639
        %v1652 = vsel %vm1646, %v1639, %v1641
        %v1653 = vsel %vm1646, %v1641, %v1643
        %v1654 = vsel %vm1646, %v1643, %v1645
        %v1656 = vrot.slane %v1483, 4
        %1657 = vrot.lane.b32.xlu0 %v1529, 60
        %v1658 = vpop.permute.xlu0 %1657
        %1659 = vrot.lane.b32.xlu0 %v1530, 60
        %v1660 = vpop.permute.xlu0 %1659
        %1661 = vrot.lane.b32.xlu0 %v1531, 60
        %v1662 = vpop.permute.xlu0 %1661
        %1663 = vrot.lane.b32.xlu0 %v1532, 60
        %v1664 = vpop.permute.xlu0 %1663
        %1665 = vrot.lane.b32.xlu0 %v1533, 60
        %v1666 = vpop.permute.xlu0 %1665
        %1667 = vrot.lane.b32.xlu0 %v1534, 60
        %v1668 = vpop.permute.xlu0 %1667
        %1669 = vrot.lane.b32.xlu0 %v1535, 60
        %v1670 = vpop.permute.xlu0 %1669
        %1671 = vrot.lane.b32.xlu0 %v1536, 60
        %v1672 = vpop.permute.xlu0 %1671
        %1673 = vrot.lane.b32.xlu0 %v1537, 60
        %v1674 = vpop.permute.xlu0 %1673
        %1675 = vrot.lane.b32.xlu0 %v1656, 60
        %v1676 = vpop.permute.xlu0 %1675
        %vm1677 = vcmask 490496
        %v1678 = vsel %vm1677, %v1658, %v1660
        %v1679 = vsel %vm1677, %v1660, %v1662
        %v1680 = vsel %vm1677, %v1662, %v1664
        %v1681 = vsel %vm1677, %v1664, %v1666
        %v1682 = vsel %vm1677, %v1666, %v1668
        %v1683 = vsel %vm1677, %v1668, %v1670
        %v1684 = vsel %vm1677, %v1670, %v1672
        %v1685 = vsel %vm1677, %v1672, %v1674
        %v1686 = vsel %vm1677, %v1674, %v1676
        %v1687 = vrot.slane %v1483, 2
        %1688 = vrot.lane.b32.xlu0 %v1565, 59
        %v1689 = vpop.permute.xlu0 %1688
        %1690 = vrot.lane.b32.xlu0 %v1566, 59
        %v1691 = vpop.permute.xlu0 %1690
        %1692 = vrot.lane.b32.xlu0 %v1567, 59
        %v1693 = vpop.permute.xlu0 %1692
        %1694 = vrot.lane.b32.xlu0 %v1568, 59
        %v1695 = vpop.permute.xlu0 %1694
        %1696 = vrot.lane.b32.xlu0 %v1569, 59
        %v1697 = vpop.permute.xlu0 %1696
        %1698 = vrot.lane.b32.xlu0 %v1570, 59
        %v1699 = vpop.permute.xlu0 %1698
        %1700 = vrot.lane.b32.xlu0 %v1571, 59
        %v1701 = vpop.permute.xlu0 %1700
        %1702 = vrot.lane.b32.xlu0 %v1572, 59
        %v1703 = vpop.permute.xlu0 %1702
        %1704 = vrot.lane.b32.xlu0 %v1573, 59
        %v1705 = vpop.permute.xlu0 %1704
        %1706 = vrot.lane.b32.xlu0 %v1687, 59
        %v1707 = vpop.permute.xlu0 %1706
        %vm1708 = vcmask 482304
        %v1709 = vsel %vm1708, %v1689, %v1691
        %v1710 = vsel %vm1708, %v1691, %v1693
        %v1711 = vsel %vm1708, %v1693, %v1695
        %v1712 = vsel %vm1708, %v1695, %v1697
        %v1713 = vsel %vm1708, %v1697, %v1699
        %v1714 = vsel %vm1708, %v1699, %v1701
        %v1715 = vsel %vm1708, %v1701, %v1703
        %v1716 = vsel %vm1708, %v1703, %v1705
        %v1717 = vsel %vm1708, %v1705, %v1707
        %1718 = vrot.lane.b32.xlu0 %v1474, 58
        %v1719 = vpop.permute.xlu0 %1718
        %1720 = vrot.lane.b32.xlu0 %v1475, 58
        %v1721 = vpop.permute.xlu0 %1720
        %1722 = vrot.lane.b32.xlu0 %v1476, 58
        %v1723 = vpop.permute.xlu0 %1722
        %1724 = vrot.lane.b32.xlu0 %v1477, 58
        %v1725 = vpop.permute.xlu0 %1724
        %1726 = vrot.lane.b32.xlu0 %v1478, 58
        %v1727 = vpop.permute.xlu0 %1726
        %1728 = vrot.lane.b32.xlu0 %v1479, 58
        %v1729 = vpop.permute.xlu0 %1728
        %1730 = vrot.lane.b32.xlu0 %v1480, 58
        %v1731 = vpop.permute.xlu0 %1730
        %1732 = vrot.lane.b32.xlu0 %v1481, 58
        %v1733 = vpop.permute.xlu0 %1732
        %1734 = vrot.lane.b32.xlu0 %v1482, 58
        %v1735 = vpop.permute.xlu0 %1734
        %1736 = vrot.lane.b32.xlu0 %v1483, 58
        %v1737 = vpop.permute.xlu0 %1736
        %vm1738 = vcmask 474112
        %v1739 = vsel %vm1738, %v1719, %v1721
        %v1740 = vsel %vm1738, %v1721, %v1723
        %v1741 = vsel %vm1738, %v1723, %v1725
        %v1742 = vsel %vm1738, %v1725, %v1727
        %v1743 = vsel %vm1738, %v1727, %v1729
        %v1744 = vsel %vm1738, %v1729, %v1731
        %v1745 = vsel %vm1738, %v1731, %v1733
        %v1746 = vsel %vm1738, %v1733, %v1735
        %v1747 = vsel %vm1738, %v1735, %v1737
        %vm1748 = vcmask 1041408
        %v1751 = vsel %vm1748, %v1474, %v1521
        %v1754 = vsel %vm1748, %v1475, %v1522
        %v1757 = vsel %vm1748, %v1476, %v1523
        %v1760 = vsel %vm1748, %v1477, %v1524
        %v1763 = vsel %vm1748, %v1478, %v1525
        %v1766 = vsel %vm1748, %v1479, %v1526
        %v1769 = vsel %vm1748, %v1480, %v1527
        %v1772 = vsel %vm1748, %v1481, %v1528
        %v1775 = vsel %vm1748, %v1482, %v1519
        %vm1776 = vcmask 1043456
        %v1778 = vsel %vm1776, %v1751, %v1557
        %v1780 = vsel %vm1776, %v1754, %v1558
        %v1782 = vsel %vm1776, %v1757, %v1559
        %v1784 = vsel %vm1776, %v1760, %v1560
        %v1786 = vsel %vm1776, %v1763, %v1561
        %v1788 = vsel %vm1776, %v1766, %v1562
        %v1790 = vsel %vm1776, %v1769, %v1563
        %v1792 = vsel %vm1776, %v1772, %v1564
        %v1794 = vsel %vm1776, %v1775, %v1555
        %vm1795 = vcmask 1045504
        %v1797 = vsel %vm1795, %v1778, %v1593
        %v1800 = vsel %vm1795, %v1780, %v1594
        %v1803 = vsel %vm1795, %v1782, %v1595
        %v1806 = vsel %vm1795, %v1784, %v1596
        %v1809 = vsel %vm1795, %v1786, %v1597
        %v1812 = vsel %vm1795, %v1788, %v1598
        %v1815 = vsel %vm1795, %v1790, %v1599
        %v1818 = vsel %vm1795, %v1792, %v1600
        %v1821 = vsel %vm1795, %v1794, %v1591
        %v1825 = vsel %vm1748, %v1620, %v1647
        %v1828 = vsel %vm1748, %v1621, %v1648
        %v1831 = vsel %vm1748, %v1622, %v1649
        %v1834 = vsel %vm1748, %v1623, %v1650
        %v1837 = vsel %vm1748, %v1624, %v1651
        %v1840 = vsel %vm1748, %v1625, %v1652
        %v1843 = vsel %vm1748, %v1626, %v1653
        %v1846 = vsel %vm1748, %v1627, %v1654
        %v1849 = vsel %vm1748, %v1618, %v1645
        %v1851 = vsel %vm1776, %v1825, %v1678
        %v1853 = vsel %vm1776, %v1828, %v1679
        %v1855 = vsel %vm1776, %v1831, %v1680
        %v1857 = vsel %vm1776, %v1834, %v1681
        %v1859 = vsel %vm1776, %v1837, %v1682
        %v1861 = vsel %vm1776, %v1840, %v1683
        %v1863 = vsel %vm1776, %v1843, %v1684
        %v1865 = vsel %vm1776, %v1846, %v1685
        %v1867 = vsel %vm1776, %v1849, %v1686
        %v1869 = vsel %vm1795, %v1851, %v1709
        %v1872 = vsel %vm1795, %v1853, %v1710
        %v1875 = vsel %vm1795, %v1855, %v1711
        %v1878 = vsel %vm1795, %v1857, %v1712
        %v1881 = vsel %vm1795, %v1859, %v1713
        %v1884 = vsel %vm1795, %v1861, %v1714
        %v1887 = vsel %vm1795, %v1863, %v1715
        %v1890 = vsel %vm1795, %v1865, %v1716
        %v1893 = vsel %vm1795, %v1867, %v1717
        %vm1895 = vcmask 293888
        %v1897 = vsel %vm1895, %v456, 0
        %v1900 = vsel %vm1748, %v1739, 0
        %v1903 = vsel %vm1748, %v1740, 0
        %v1906 = vsel %vm1748, %v1741, 0
        %v1909 = vsel %vm1748, %v1742, 0
        %v1912 = vsel %vm1748, %v1743, 0
        %v1915 = vsel %vm1748, %v1744, 0
        %v1918 = vsel %vm1748, %v1745, 0
        %v1921 = vsel %vm1748, %v1746, 0
        %v1924 = vsel %vm1748, %v1747, 0
        %1926 = vmatprep.subr.bf16.mxu0 %v1800
        %1927 = vmatpush1.bf16.msra.mxu0 %v1797
        %1928 = vmatprep.subr.bf16.mxu0 %v1872
        %1929 = vmatpush1.bf16.msra.mxu0 %v1869
        %1930 = vmatprep.subr.bf16.mxu0 %v1903
        %1931 = vmatpush1.bf16.msra.mxu0 %v1900
        %1932 = vmatprep.subr.bf16.mxu0 0
        %1933 = vmatpush1.bf16.msra.mxu0 0
        %1934 = vmatprep.subr.bf16.mxu0 0
        %1935 = vmatpush1.bf16.msra.mxu0 0
        %1936 = vmatprep.subr.bf16.mxu0 0
        %1937 = vmatpush1.bf16.msra.mxu0 0
        %1938 = vmatprep.subr.bf16.mxu0 0
        %1939 = vmatpush1.bf16.msra.mxu0 0
        %1940 = vmatprep.subr.bf16.mxu0 0
        %1941 = vmatpush1.bf16.msra.mxu0 0
        %1942 = vmatprep.subr.bf16.mxu0 0
        %1943 = vmatpush1.bf16.msra.mxu0 0
        %1944 = vmatprep.subr.bf16.mxu0 0
        %1945 = vmatpush1.bf16.msra.mxu0 0
        %1946 = vmatprep.subr.bf16.mxu0 0
        %1947 = vmatpush1.bf16.msra.mxu0 0
        %1948 = vmatprep.subr.bf16.mxu0 0
        %1949 = vmatpush1.bf16.msra.mxu0 0
        %1950 = vmatprep.subr.bf16.mxu0 0
        %1951 = vmatpush1.bf16.msra.mxu0 0
        %1952 = vmatprep.subr.bf16.mxu0 0
        %1953 = vmatpush1.bf16.msra.mxu0 0
        %1954 = vmatprep.subr.bf16.mxu0 0
        %1955 = vmatpush1.bf16.msra.mxu0 0
        %1956 = vmatprep.subr.bf16.mxu0 0
        %1957 = vmatpush1.bf16.msra.mxu0 0
        %1958 = vmatprep.mubr.bf16.mxu0 0
        %1959 = vmatmul.mubr.bf16.gmra.mrb[0].mxu0 %v1897
        %v1960 = vpop.f32.mrb[0].mxu0
        %v1961 = vadd.f32 0.0, %v1960
        %v1962 = vpop.f32.mrb[0].mxu0
        %v1963 = vadd.f32 0.0, %v1962
        %v1964 = vpop.f32.mrb[0].mxu0
        %v1965 = vpop.f32.mrb[0].mxu0
        %1966 = vdwg.mxu0
        %1967 = vmatprep.subr.bf16.mxu0 %v1806
        %1968 = vmatpush1.bf16.msra.mxu0 %v1803
        %1969 = vmatprep.subr.bf16.mxu0 %v1878
        %1970 = vmatpush1.bf16.msra.mxu0 %v1875
        %1971 = vmatprep.subr.bf16.mxu0 %v1909
        %1972 = vmatpush1.bf16.msra.mxu0 %v1906
        %1973 = vmatprep.subr.bf16.mxu0 0
        %1974 = vmatpush1.bf16.msra.mxu0 0
        %1975 = vmatprep.subr.bf16.mxu0 0
        %1976 = vmatpush1.bf16.msra.mxu0 0
        %1977 = vmatprep.subr.bf16.mxu0 0
        %1978 = vmatpush1.bf16.msra.mxu0 0
        %1979 = vmatprep.subr.bf16.mxu0 0
        %1980 = vmatpush1.bf16.msra.mxu0 0
        %1981 = vmatprep.subr.bf16.mxu0 0
        %1982 = vmatpush1.bf16.msra.mxu0 0
        %1983 = vmatprep.subr.bf16.mxu0 0
        %1984 = vmatpush1.bf16.msra.mxu0 0
        %1985 = vmatprep.subr.bf16.mxu0 0
        %1986 = vmatpush1.bf16.msra.mxu0 0
        %1987 = vmatprep.subr.bf16.mxu0 0
        %1988 = vmatpush1.bf16.msra.mxu0 0
        %1989 = vmatprep.subr.bf16.mxu0 0
        %1990 = vmatpush1.bf16.msra.mxu0 0
        %1991 = vmatprep.subr.bf16.mxu0 0
        %1992 = vmatpush1.bf16.msra.mxu0 0
        %1993 = vmatprep.subr.bf16.mxu0 0
        %1994 = vmatpush1.bf16.msra.mxu0 0
        %1995 = vmatprep.subr.bf16.mxu0 0
        %1996 = vmatpush1.bf16.msra.mxu0 0
        %1997 = vmatprep.subr.bf16.mxu0 0
        %1998 = vmatpush1.bf16.msra.mxu0 0
        %1999 = vmatprep.mubr.bf16.mxu0 0
        %2000 = vmatmul.mubr.bf16.gmra.mrb[0].mxu0 %v1897
        %v2001 = vpop.f32.mrb[0].mxu0
        %v2002 = vadd.f32 0.0, %v2001
        %v2003 = vpop.f32.mrb[0].mxu0
        %v2004 = vadd.f32 0.0, %v2003
        %v2005 = vpop.f32.mrb[0].mxu0
        %v2006 = vpop.f32.mrb[0].mxu0
        %2007 = vdwg.mxu0
        %2008 = vmatprep.subr.bf16.mxu0 %v1812
        %2009 = vmatpush1.bf16.msra.mxu0 %v1809
        %2010 = vmatprep.subr.bf16.mxu0 %v1884
        %2011 = vmatpush1.bf16.msra.mxu0 %v1881
        %2012 = vmatprep.subr.bf16.mxu0 %v1915
        %2013 = vmatpush1.bf16.msra.mxu0 %v1912
        %2014 = vmatprep.subr.bf16.mxu0 0
        %2015 = vmatpush1.bf16.msra.mxu0 0
        %2016 = vmatprep.subr.bf16.mxu0 0
        %2017 = vmatpush1.bf16.msra.mxu0 0
        %2018 = vmatprep.subr.bf16.mxu0 0
        %2019 = vmatpush1.bf16.msra.mxu0 0
        %2020 = vmatprep.subr.bf16.mxu0 0
        %2021 = vmatpush1.bf16.msra.mxu0 0
        %2022 = vmatprep.subr.bf16.mxu0 0
        %2023 = vmatpush1.bf16.msra.mxu0 0
        %2024 = vmatprep.subr.bf16.mxu0 0
        %2025 = vmatpush1.bf16.msra.mxu0 0
        %2026 = vmatprep.subr.bf16.mxu0 0
        %2027 = vmatpush1.bf16.msra.mxu0 0
        %2028 = vmatprep.subr.bf16.mxu0 0
        %2029 = vmatpush1.bf16.msra.mxu0 0
        %2030 = vmatprep.subr.bf16.mxu0 0
        %2031 = vmatpush1.bf16.msra.mxu0 0
        %2032 = vmatprep.subr.bf16.mxu0 0
        %2033 = vmatpush1.bf16.msra.mxu0 0
        %2034 = vmatprep.subr.bf16.mxu0 0
        %2035 = vmatpush1.bf16.msra.mxu0 0
        %2036 = vmatprep.subr.bf16.mxu0 0
        %2037 = vmatpush1.bf16.msra.mxu0 0
        %2038 = vmatprep.subr.bf16.mxu0 0
        %2039 = vmatpush1.bf16.msra.mxu0 0
        %2040 = vmatprep.mubr.bf16.mxu0 0
        %2041 = vmatmul.mubr.bf16.gmra.mrb[0].mxu0 %v1897
        %v2042 = vpop.f32.mrb[0].mxu0
        %v2043 = vadd.f32 0.0, %v2042
        %v2044 = vpop.f32.mrb[0].mxu0
        %v2045 = vadd.f32 0.0, %v2044
        %v2046 = vpop.f32.mrb[0].mxu0
        %v2047 = vpop.f32.mrb[0].mxu0
        %2048 = vdwg.mxu0
        %2049 = vmatprep.subr.bf16.mxu0 %v1818
        %2050 = vmatpush1.bf16.msra.mxu0 %v1815
        %2051 = vmatprep.subr.bf16.mxu0 %v1890
        %2052 = vmatpush1.bf16.msra.mxu0 %v1887
        %2053 = vmatprep.subr.bf16.mxu0 %v1921
        %2054 = vmatpush1.bf16.msra.mxu0 %v1918
        %2055 = vmatprep.subr.bf16.mxu0 0
        %2056 = vmatpush1.bf16.msra.mxu0 0
        %2057 = vmatprep.subr.bf16.mxu0 0
        %2058 = vmatpush1.bf16.msra.mxu0 0
        %2059 = vmatprep.subr.bf16.mxu0 0
        %2060 = vmatpush1.bf16.msra.mxu0 0
        %2061 = vmatprep.subr.bf16.mxu0 0
        %2062 = vmatpush1.bf16.msra.mxu0 0
        %2063 = vmatprep.subr.bf16.mxu0 0
        %2064 = vmatpush1.bf16.msra.mxu0 0
        %2065 = vmatprep.subr.bf16.mxu0 0
        %2066 = vmatpush1.bf16.msra.mxu0 0
        %2067 = vmatprep.subr.bf16.mxu0 0
        %2068 = vmatpush1.bf16.msra.mxu0 0
        %2069 = vmatprep.subr.bf16.mxu0 0
        %2070 = vmatpush1.bf16.msra.mxu0 0
        %2071 = vmatprep.subr.bf16.mxu0 0
        %2072 = vmatpush1.bf16.msra.mxu0 0
        %2073 = vmatprep.subr.bf16.mxu0 0
        %2074 = vmatpush1.bf16.msra.mxu0 0
        %2075 = vmatprep.subr.bf16.mxu0 0
        %2076 = vmatpush1.bf16.msra.mxu0 0
        %2077 = vmatprep.subr.bf16.mxu0 0
        %2078 = vmatpush1.bf16.msra.mxu0 0
        %2079 = vmatprep.subr.bf16.mxu0 0
        %2080 = vmatpush1.bf16.msra.mxu0 0
        %2081 = vmatprep.mubr.bf16.mxu0 0
        %2082 = vmatmul.mubr.bf16.gmra.mrb[0].mxu0 %v1897
        %v2083 = vpop.f32.mrb[0].mxu0
        %v2084 = vadd.f32 0.0, %v2083
        %v2085 = vpop.f32.mrb[0].mxu0
        %v2086 = vadd.f32 0.0, %v2085
        %v2087 = vpop.f32.mrb[0].mxu0
        %v2088 = vpop.f32.mrb[0].mxu0
        %2089 = vdwg.mxu0
        %2090 = vmatprep.subr.bf16.mxu0 0
        %2091 = vmatpush1.bf16.msra.mxu0 %v1821
        %2092 = vmatprep.subr.bf16.mxu0 0
        %2093 = vmatpush1.bf16.msra.mxu0 %v1893
        %2094 = vmatprep.subr.bf16.mxu0 0
        %2095 = vmatpush1.bf16.msra.mxu0 %v1924
        %2096 = vmatprep.subr.bf16.mxu0 0
        %2097 = vmatpush1.bf16.msra.mxu0 0
        %2098 = vmatprep.subr.bf16.mxu0 0
        %2099 = vmatpush1.bf16.msra.mxu0 0
        %2100 = vmatprep.subr.bf16.mxu0 0
        %2101 = vmatpush1.bf16.msra.mxu0 0
        %2102 = vmatprep.subr.bf16.mxu0 0
        %2103 = vmatpush1.bf16.msra.mxu0 0
        %2104 = vmatprep.subr.bf16.mxu0 0
        %2105 = vmatpush1.bf16.msra.mxu0 0
        %2106 = vmatprep.subr.bf16.mxu0 0
        %2107 = vmatpush1.bf16.msra.mxu0 0
        %2108 = vmatprep.subr.bf16.mxu0 0
        %2109 = vmatpush1.bf16.msra.mxu0 0
        %2110 = vmatprep.subr.bf16.mxu0 0
        %2111 = vmatpush1.bf16.msra.mxu0 0
        %2112 = vmatprep.subr.bf16.mxu0 0
        %2113 = vmatpush1.bf16.msra.mxu0 0
        %2114 = vmatprep.subr.bf16.mxu0 0
        %2115 = vmatpush1.bf16.msra.mxu0 0
        %2116 = vmatprep.subr.bf16.mxu0 0
        %2117 = vmatpush1.bf16.msra.mxu0 0
        %2118 = vmatprep.subr.bf16.mxu0 0
        %2119 = vmatpush1.bf16.msra.mxu0 0
        %2120 = vmatprep.subr.bf16.mxu0 0
        %2121 = vmatpush1.bf16.msra.mxu0 0
        %2122 = vmatprep.mubr.bf16.mxu0 0
        %2123 = vmatmul.mubr.bf16.gmra.mrb[0].mxu0 %v1897
        %v2124 = vpop.f32.mrb[0].mxu0
        %v2125 = vadd.f32 0.0, %v2124
        %v2126 = vpop.f32.mrb[0].mxu0
        %v2127 = vpop.f32.mrb[0].mxu0
        %v2128 = vpop.f32.mrb[0].mxu0
        %2129 = vdwg.mxu0
        %2131 = vrot.lane.b32.xlu0 %v1961, 126
        %v2132 = vpop.permute.xlu0 %2131
        %2134 = vrot.lane.b32.xlu0 %v1961, 124
        %v2135 = vpop.permute.xlu0 %2134
        %2138 = vrot.lane.b32.xlu0 %v1961, 122
        %v2139 = vpop.permute.xlu0 %2138
        %2140 = vrot.lane.b32.xlu0 %v1963, 122
        %v2141 = vpop.permute.xlu0 %2140
        %vm2142 = vcmask 998400
        %v2143 = vsel %vm2142, %v2139, %v2141
        %2145 = vrot.lane.b32.xlu0 %v1963, 120
        %v2146 = vpop.permute.xlu0 %2145
        %2148 = vrot.lane.b32.xlu0 %v1963, 118
        %v2149 = vpop.permute.xlu0 %2148
        %2151 = vrot.lane.b32.xlu0 %v1963, 116
        %v2152 = vpop.permute.xlu0 %2151
        %2155 = vrot.lane.b32.xlu0 %v1963, 114
        %v2156 = vpop.permute.xlu0 %2155
        %2157 = vrot.lane.b32.xlu0 %v2002, 114
        %v2158 = vpop.permute.xlu0 %2157
        %vm2159 = vcmask 932864
        %v2160 = vsel %vm2159, %v2156, %v2158
        %2162 = vrot.lane.b32.xlu0 %v2002, 112
        %v2163 = vpop.permute.xlu0 %2162
        %2165 = vrot.lane.b32.xlu0 %v2002, 110
        %v2166 = vpop.permute.xlu0 %2165
        %2168 = vrot.lane.b32.xlu0 %v2002, 108
        %v2169 = vpop.permute.xlu0 %2168
        %2172 = vrot.lane.b32.xlu0 %v2002, 106
        %v2173 = vpop.permute.xlu0 %2172
        %2174 = vrot.lane.b32.xlu0 %v2004, 106
        %v2175 = vpop.permute.xlu0 %2174
        %vm2176 = vcmask 867328
        %v2177 = vsel %vm2176, %v2173, %v2175
        %2179 = vrot.lane.b32.xlu0 %v2004, 104
        %v2180 = vpop.permute.xlu0 %2179
        %2182 = vrot.lane.b32.xlu0 %v2004, 102
        %v2183 = vpop.permute.xlu0 %2182
        %2185 = vrot.lane.b32.xlu0 %v2004, 100
        %v2186 = vpop.permute.xlu0 %2185
        %2189 = vrot.lane.b32.xlu0 %v2004, 98
        %v2190 = vpop.permute.xlu0 %2189
        %2191 = vrot.lane.b32.xlu0 %v2043, 98
        %v2192 = vpop.permute.xlu0 %2191
        %vm2193 = vcmask 801792
        %v2194 = vsel %vm2193, %v2190, %v2192
        %vm2196 = vcmask 261120
        %v2197 = vsel %vm2196, %v1961, %v2132
        %vm2198 = vcmask 523264
        %v2199 = vsel %vm2198, %v2197, %v2135
        %vm2200 = vcmask 785408
        %v2201 = vsel %vm2200, %v2199, %v2143
        %v2202 = vsel %vm2196, %v2146, %v2149
        %v2203 = vsel %vm2198, %v2202, %v2152
        %v2204 = vsel %vm2200, %v2203, %v2160
        %v2205 = vsel %vm2196, %v2163, %v2166
        %v2206 = vsel %vm2198, %v2205, %v2169
        %v2207 = vsel %vm2200, %v2206, %v2177
        %v2208 = vsel %vm2196, %v2180, %v2183
        %v2209 = vsel %vm2198, %v2208, %v2186
        %v2210 = vsel %vm2200, %v2209, %v2194
        %2211 = vrot.lane.b32.xlu0 %v2043, 96
        %v2212 = vpop.permute.xlu0 %2211
        %2214 = vrot.lane.b32.xlu0 %v2043, 94
        %v2215 = vpop.permute.xlu0 %2214
        %2218 = vrot.lane.b32.xlu0 %v2043, 92
        %v2219 = vpop.permute.xlu0 %2218
        %2220 = vrot.lane.b32.xlu0 %v2045, 92
        %v2221 = vpop.permute.xlu0 %2220
        %vm2222 = vcmask 752640
        %v2223 = vsel %vm2222, %v2219, %v2221
        %2225 = vrot.lane.b32.xlu0 %v2045, 90
        %v2226 = vpop.permute.xlu0 %2225
        %2228 = vrot.lane.b32.xlu0 %v2045, 88
        %v2229 = vpop.permute.xlu0 %2228
        %2231 = vrot.lane.b32.xlu0 %v2045, 86
        %v2232 = vpop.permute.xlu0 %2231
        %2235 = vrot.lane.b32.xlu0 %v2045, 84
        %v2236 = vpop.permute.xlu0 %2235
        %2237 = vrot.lane.b32.xlu0 %v2084, 84
        %v2238 = vpop.permute.xlu0 %2237
        %vm2239 = vcmask 687104
        %v2240 = vsel %vm2239, %v2236, %v2238
        %2242 = vrot.lane.b32.xlu0 %v2084, 82
        %v2243 = vpop.permute.xlu0 %2242
        %2245 = vrot.lane.b32.xlu0 %v2084, 80
        %v2246 = vpop.permute.xlu0 %2245
        %2248 = vrot.lane.b32.xlu0 %v2084, 78
        %v2249 = vpop.permute.xlu0 %2248
        %2252 = vrot.lane.b32.xlu0 %v2084, 76
        %v2253 = vpop.permute.xlu0 %2252
        %2254 = vrot.lane.b32.xlu0 %v2086, 76
        %v2255 = vpop.permute.xlu0 %2254
        %vm2256 = vcmask 621568
        %v2257 = vsel %vm2256, %v2253, %v2255
        %2259 = vrot.lane.b32.xlu0 %v2086, 74
        %v2260 = vpop.permute.xlu0 %2259
        %2262 = vrot.lane.b32.xlu0 %v2086, 72
        %v2263 = vpop.permute.xlu0 %2262
        %2265 = vrot.lane.b32.xlu0 %v2086, 70
        %v2266 = vpop.permute.xlu0 %2265
        %2269 = vrot.lane.b32.xlu0 %v2086, 68
        %v2270 = vpop.permute.xlu0 %2269
        %2271 = vrot.lane.b32.xlu0 %v2125, 68
        %v2272 = vpop.permute.xlu0 %2271
        %vm2273 = vcmask 556032
        %v2274 = vsel %vm2273, %v2270, %v2272
        %2276 = vrot.lane.b32.xlu0 %v2125, 66
        %v2277 = vpop.permute.xlu0 %2276
        %v2279 = vsel %vm2196, %v2212, %v2215
        %v2280 = vsel %vm2198, %v2279, %v2223
        %v2281 = vsel %vm2200, %v2280, %v2226
        %v2282 = vsel %vm2196, %v2229, %v2232
        %v2283 = vsel %vm2198, %v2282, %v2240
        %v2284 = vsel %vm2200, %v2283, %v2243
        %v2285 = vsel %vm2196, %v2246, %v2249
        %v2286 = vsel %vm2198, %v2285, %v2257
        %v2287 = vsel %vm2200, %v2286, %v2260
        %v2288 = vsel %vm2196, %v2263, %v2266
        %v2289 = vsel %vm2198, %v2288, %v2274
        %v2290 = vsel %vm2200, %v2289, %v2277
        %2292 = vset.pattern.permute.xlu0 0
        %2293 = vperm.xlu0 %2292, %v457
        %v2294 = vpop.permute.xlu0 %2293
        %v2296 = vadd.f32 %v2201, %v2294
        %v2297 = vadd.f32 %v2204, %v2294
        %v2298 = vadd.f32 %v2207, %v2294
        %v2299 = vadd.f32 %v2210, %v2294
        %v2300 = vadd.f32 %v2281, %v2294
        %v2301 = vadd.f32 %v2284, %v2294
        %v2302 = vadd.f32 %v2287, %v2294
        %v2303 = vadd.f32 %v2290, %v2294
        %s2304 = smul.u32 %s22, 8
        %s2305 = smul.addr %s2304, 8
        %s2306 = scalar_lea.vmem [#allocation2], %s2305
        %2307 = vst [vmem:[%s2306] sm:$0xff] %v2296
        %2308 = vst [vmem:[%s2306 + $0x8] sm:$0xff] %v2297
        %2309 = vst [vmem:[%s2306 + $0x10] sm:$0xff] %v2298
        %2310 = vst [vmem:[%s2306 + $0x18] sm:$0xff] %v2299
        %2311 = vst [vmem:[%s2306 + $0x20] sm:$0xff] %v2300
        %2312 = vst [vmem:[%s2306 + $0x28] sm:$0xff] %v2301
        %2313 = vst [vmem:[%s2306 + $0x30] sm:$0xff] %v2302
        %2314 = vst [vmem:[%s2306 + $0x38] sm:$0xff] %v2303
        %v2315 = vadd.f32 %v2296, %v2297
        %v2316 = vadd.f32 %v2315, %v2298
        %v2317 = vadd.f32 %v2316, %v2299
        %v2318 = vadd.f32 %v2317, %v2300
        %v2319 = vadd.f32 %v2318, %v2301
        %v2320 = vadd.f32 %v2319, %v2302
        %v2321 = vadd.f32 %v2320, %v2303
        %2322 = vadd.xlane.f32.xlu0 %v2321
        %v2323 = vpop.xlane.xlu0 %2322
        %v2324 = vmul.f32 %v2296, %v2296
        %v2325 = vmul.f32 %v2297, %v2297
        %v2326 = vmul.f32 %v2298, %v2298
        %v2327 = vmul.f32 %v2299, %v2299
        %v2328 = vmul.f32 %v2300, %v2300
        %v2329 = vmul.f32 %v2301, %v2301
        %v2330 = vmul.f32 %v2302, %v2302
        %v2331 = vmul.f32 %v2303, %v2303
        %v2332 = vadd.f32 %v2324, %v2325
        %v2333 = vadd.f32 %v2332, %v2326
        %v2334 = vadd.f32 %v2333, %v2327
        %v2335 = vadd.f32 %v2334, %v2328
        %v2336 = vadd.f32 %v2335, %v2329
        %v2337 = vadd.f32 %v2336, %v2330
        %v2338 = vadd.f32 %v2337, %v2331
        %2339 = vadd.xlane.f32.xlu0 %v2338
        %v2340 = vpop.xlane.xlu0 %2339
        %v2341 = vld [vmem:[#allocation3] sm:$0xff]
        %vm2342 = vcmask 7168
        %v2343 = vsel %vm2342, %v2323, %v2340
        %v2344 = vadd.f32 %v2341, %v2343
        %vm2345 = vcmask 15360
        %2346 = vst.msk [vmem:[#allocation3] sm:$0xff] %vm2345, %v2344
      $region52: #{up_conv_forward.1} parent=43 // pred_fallthru
        _
      %p2347 = scmp.eq.s32.totalorder %s21, 1
      // Predicated region
      $region53: #{up_conv_forward.1} parent=43 // pred_check
        %p2348 = pneg %p2347
      $region54: #{up_conv_forward.1} parent=43 // pred_check_branch
        %2350 = sbr.rel (%p2348) target = $region56
      $region55: #{up_conv_forward.1} parent=43 // pred_region
        %v2351 = vld [vmem:[#allocation3] sm:$0xff]
        %v2352 = vld [vmem:[%s4] sm:$0xff]
        %v2353 = vld [vmem:[%s5] sm:$0xff]
        %v2354 = vmul.f32 %v2351, 0.00048828125
        %v2355 = vmul.f32 %v2354, %v2354
        %2357 = vrot.lane.b32.xlu0 %v2355, 1
        %v2358 = vpop.permute.xlu0 %2357
        %v2360 = vsub.f32 %v2354, %v2358
        %v2361 = vmax.f32 %v2360, 0.0
        %v2362 = vadd.f32 %v2361, 1e-05
        %v2363 = vrsqrt.pop %v2362
        %2365 = vrot.lane.b32.xlu0 %v2363, 127
        %v2366 = vpop.permute.xlu0 %2365
        %v2368 = vmul.f32 %v2352, %v2366
        %v2369 = vmul.f32 %v2354, %v2368
        %v2370 = vsub.f32 %v2353, %v2369
        %s2371 = smul.u32 %s22, 8
        %s2372 = smul.addr %s2371, 8
        %s2373 = scalar_lea.vmem [#allocation2], %s2372
        %v2374 = vld [vmem:[%s2373] sm:$0xff]
        %v2375 = vld [vmem:[%s2373 + $0x8] sm:$0xff]
        %v2376 = vld [vmem:[%s2373 + $0x10] sm:$0xff]
        %v2377 = vld [vmem:[%s2373 + $0x18] sm:$0xff]
        %v2378 = vld [vmem:[%s2373 + $0x20] sm:$0xff]
        %v2379 = vld [vmem:[%s2373 + $0x28] sm:$0xff]
        %v2380 = vld [vmem:[%s2373 + $0x30] sm:$0xff]
        %v2381 = vld [vmem:[%s2373 + $0x38] sm:$0xff]
        %2383 = vset.pattern.permute.xlu0 0
        %2384 = vperm.xlu0 %2383, %v2368
        %v2385 = vpop.permute.xlu0 %2384
        %v2387 = vmul.f32 %v2374, %v2385
        %v2388 = vmul.f32 %v2375, %v2385
        %v2389 = vmul.f32 %v2376, %v2385
        %v2390 = vmul.f32 %v2377, %v2385
        %v2391 = vmul.f32 %v2378, %v2385
        %v2392 = vmul.f32 %v2379, %v2385
        %v2393 = vmul.f32 %v2380, %v2385
        %v2394 = vmul.f32 %v2381, %v2385
        %2396 = vset.pattern.permute.xlu0 0
        %2397 = vperm.xlu0 %2396, %v2370
        %v2398 = vpop.permute.xlu0 %2397
        %v2400 = vadd.f32 %v2387, %v2398
        %v2401 = vadd.f32 %v2388, %v2398
        %v2402 = vadd.f32 %v2389, %v2398
        %v2403 = vadd.f32 %v2390, %v2398
        %v2404 = vadd.f32 %v2391, %v2398
        %v2405 = vadd.f32 %v2392, %v2398
        %v2406 = vadd.f32 %v2393, %v2398
        %v2407 = vadd.f32 %v2394, %v2398
        %v2408 = vmax.f32 %v2400, 0.0
        %v2409 = vmax.f32 %v2401, 0.0
        %v2410 = vmax.f32 %v2402, 0.0
        %v2411 = vmax.f32 %v2403, 0.0
        %v2412 = vmax.f32 %v2404, 0.0
        %v2413 = vmax.f32 %v2405, 0.0
        %v2414 = vmax.f32 %v2406, 0.0
        %v2415 = vmax.f32 %v2407, 0.0
        %2416 = vst [vmem:[%s281] sm:$0xff] %v2408
        %2417 = vst [vmem:[%s281 + $0x8] sm:$0xff] %v2409
        %2418 = vst [vmem:[%s281 + $0x10] sm:$0xff] %v2410
        %2419 = vst [vmem:[%s281 + $0x18] sm:$0xff] %v2411
        %2420 = vst [vmem:[%s281 + $0x20] sm:$0xff] %v2412
        %2421 = vst [vmem:[%s281 + $0x28] sm:$0xff] %v2413
        %2422 = vst [vmem:[%s281 + $0x30] sm:$0xff] %v2414
        %2423 = vst [vmem:[%s281 + $0x38] sm:$0xff] %v2415
      $region56: #{up_conv_forward.1} parent=43 // pred_fallthru
        _
      %s2424 = smul.u32 %s21, %s22
      %p2425 = scmp.lt.s32.totalorder %s2424, 1
      %s2426 = scalar_select %p2425, %s2424, 1
      %s2427 = smul.addr %s2426, 8
      %s2428 = smul.addr %s2427, 8
      %s2429 = scalar_lea.vmem %s6, %s2428
      // Predicated region
      $region57: #{up_conv_forward.1} parent=43 // pred_check
        %p2430 = pneg %p184
      $region58: #{up_conv_forward.1} parent=43 // pred_check_branch
        %2432 = sbr.rel (%p2430) target = $region60
      $region59: #{up_conv_forward.1} parent=43 // pred_region
        %s2433 = smul.u32 %s21, %s22
      $region60: #{up_conv_forward.1} parent=43 // pred_fallthru
        _
    $region44: #{up_conv_forward.1} parent=5 // pred_fallthru
      _
    %p2434 = scmp.le.s32.totalorder 2, %s12
    // Predicated region
    $region61: #{up_conv_forward.1} parent=5 // pred_check
      %p2435 = pneg %p2434
    $region62: #{up_conv_forward.1} parent=5 // pred_check_branch
      %2437 = sbr.rel (%p2435) target = $region64
    $region63: #{up_conv_forward.1} parent=5 // pred_region
      %s2438 = ssub.s32 %s12, 2
      // Predicated region
      $region65: #{up_conv_forward.1} parent=63 // pred_check
        %p2439 = pneg %p190
      $region66: #{up_conv_forward.1} parent=63 // pred_check_branch
        %2441 = sbr.rel (%p2439) target = $region68
      $region67: #{up_conv_forward.1} parent=63 // pred_region
        %s2442 = smul.u32 %s23, %s24
        %p2443 = scmp.lt.s32.totalorder %s2442, 1
        %s2444 = scalar_select %p2443, %s2442, 1
        %s2445 = smul.addr %s2444, 8
        %s2446 = smul.addr %s2445, 8
        %s2447 = scalar_lea.vmem %s6, %s2446
      $region68: #{up_conv_forward.1} parent=63 // pred_fallthru
        _
    $region64: #{up_conv_forward.1} parent=5 // pred_fallthru
      _
  $region6: #{up_conv_forward.1} parent=0 // loop_footer
    %s16 = sadd.s32 1, %s12
  $region7: #{up_conv_forward.1} parent=0 // loop_footer_branch
    %11 = sbr.rel target = $region3
  $region8: #{up_conv_forward.1} parent=0 // loop_exit
    _

</llo_original>
